<compile_context>
chip_gen: v6e
topology: v6e:2x2x1
jax: 0.10.0
libtpu: 0.0.40
codegen_flags: <defaults>
</compile_context>

<pallas_src>
import functools

import numpy as np
import jax
import jax.numpy as jnp
from jax.experimental import pallas as pl
from jax.experimental.pallas import tpu as pltpu


# ----------------------------------------------------------------------------
# Kernel: whole MSFEM for the whole (small) batch, fully VMEM-resident.
# ----------------------------------------------------------------------------
def msfem_kernel(x_ref, m_ref, bcat_ref, bd_ref, bf_ref, o_ref,
                 xp_ref, lhs_ref, *, B, H, W, Cin, K):
    """x_ref:   (B, H, W*Cin)          row-flattened channels-last input (f32)
       m_ref:   (K*W*Cin, W*4*Cout)    stacked band weight matrix (bf16)
       bcat_ref:(1, W*4*Cout)          per-branch biases, tiled over x (f32)
       bd_ref:  (W*4*Cout, W*Cout)     block-diagonal 1x1 fusion weights (bf16)
       bf_ref:  (1, W*Cout)            fusion bias, tiled over x (f32)
       o_ref:   (B, H, W*Cout)         row-flattened channels-last output
       xp_ref:  (B, H+K-1, W*Cin) f32  scratch: y zero padding
       lhs_ref: (B, H, K*W*Cin) bf16   scratch: stacked matmul LHS"""
    P = K // 2
    WC = W * Cin

    # In-kernel zero padding along rows (y).  Only the 2*P pad rows are
    # zeroed; the interior is fully overwritten.  The x-direction padding is
    # free: it is folded into the band structure of m_ref at prep time.
    xp_ref[:, 0:P, :] = jnp.zeros((B, P, WC), xp_ref.dtype)
    xp_ref[:, P + H:P + H + P, :] = jnp.zeros((B, P, WC), xp_ref.dtype)
    xp_ref[:, P:P + H, :] = x_ref[...]

    # Stacked LHS: 7 shifted-row copies of the padded input, written (as bf16)
    # into lane-offset column blocks.  Column block dy corresponds to the
    # rows of m_ref holding the dy-th kernel row of all four branches.
    for dy in range(K):
        lhs_ref[:, :, dy * WC:(dy + 1) * WC] = (
            xp_ref[:, dy:dy + H, :].astype(lhs_ref.dtype))

    # ONE deep bf16 MXU matmul (M=B*H=32, K=K*W*Cin=448, N=W*4*Cout=512) for
    # all four conv branches of the whole batch, f32 accumulation.
    lhs = lhs_ref[...].reshape(B * H, K * WC)
    acc = jnp.dot(lhs, m_ref[...], preferred_element_type=jnp.float32)

    # Fused bias + ReLU in f32 (this is the torch.cat of the relu'd branches).
    feat = jnp.maximum(acc + bcat_ref[...], 0.0)

    # 1x1 fusion conv as one block-diagonal bf16 matmul, fused f32 bias,
    # lane-dense store.
    out = jnp.dot(feat.astype(bd_ref.dtype), bd_ref[...],
                  preferred_element_type=jnp.float32) + bf_ref[...]
    o_ref[...] = out.reshape(o_ref.shape).astype(o_ref.dtype)


# ----------------------------------------------------------------------------
# Parameter preparation (one-time, host side): embed the 3/5/7/dilated-3 conv
# weights into a shared 7x7 window, fold the x taps + x zero padding into a
# single stacked band matrix, build the block-diagonal 1x1 fusion weight, and
# cast the big matrices to bf16.
# ----------------------------------------------------------------------------
def prepare_msfem_params(raw, H, W):
    Cout, Cin = raw["w3"].shape[:2]
    C4 = 4 * Cout
    K = 7
    P = K // 2

    def embed(w, dilation=1):
        # (Cout, Cin, k, k) torch layout -> (K, K, Cin, Cout) inside the 7x7 window.
        k = w.shape[-1]
        w_hwio = np.transpose(np.asarray(w, np.float32), (2, 3, 1, 0))
        full = np.zeros((K, K, Cin, Cout), np.float32)
        idx = (P - dilation * (k // 2)) + dilation * np.arange(k)
        full[np.ix_(idx, idx)] = w_hwio
        return full

    # Branch order must match torch.cat([feat3, feat5, feat7, feat_dilated]).
    w_all = np.concatenate([embed(raw["w3"], 1), embed(raw["w5"], 1),
                            embed(raw["w7"], 1), embed(raw["wd"], 2)],
                           axis=-1)                              # (7,7,Cin,4*Cout)

    # Band matrices: M[dy, xin*Cin+ci, x*C4+j] = w_all[dy, xin-x+P, ci, j]
    # (zero outside the band == implicit x zero padding).
    m = np.zeros((K, W * Cin, W * C4), np.float32)
    for dy in range(K):
        for dx in range(K):
            blk = w_all[dy, dx]                                  # (Cin, C4)
            for x in range(W):
                xin = x + dx - P
                if 0 <= xin < W:
                    m[dy, xin * Cin:(xin + 1) * Cin, x * C4:(x + 1) * C4] = blk
    # Stack the K per-row-shift matrices along the contraction axis so the
    # kernel needs only ONE matmul; rows [dy*W*Cin:(dy+1)*W*Cin] hold m[dy].
    mflat = m.reshape(K * W * Cin, W * C4)

    # Scaling guard: the band matrix grows as W^2 and would blow past v7x's
    # 64 MiB VMEM around W~128 even in bf16.
    # TODO(synk): if W grows beyond ~64, tile the x (column) axis of Mflat /
    # feat in the kernel instead of materializing the full band matrix.
    assert mflat.size * 2 < 16 * 2**20, "band matrix too large; tile x axis"

    bcat = np.concatenate([np.asarray(raw["b3"]), np.asarray(raw["b5"]),
                           np.asarray(raw["b7"]), np.asarray(raw["bd"])]
                          ).astype(np.float32)                   # (C4,)
    bcat_row = np.tile(bcat, W)[None, :]                         # (1, W*C4)

    wf = np.asarray(raw["wf"], np.float32)[:, :, 0, 0].T         # (C4, Cout)
    bd = np.kron(np.eye(W, dtype=np.float32), wf)                # (W*C4, W*Cout)
    bf_row = np.tile(np.asarray(raw["bf"], np.float32), W)[None, :]  # (1, W*Cout)

    return dict(Mflat=jnp.asarray(mflat, jnp.bfloat16),
                bcat_row=jnp.asarray(bcat_row),
                BD=jnp.asarray(bd, jnp.bfloat16),
                bf_row=jnp.asarray(bf_row))


# ----------------------------------------------------------------------------
# Forward wrapper: NCHW in -> NCHW out, single pallas_call, single grid step.
# ----------------------------------------------------------------------------
def msfem_forward(x_nchw, p, *, Cout):
    B, Cin, H, W = x_nchw.shape
    K = 7
    C4 = 4 * Cout

    # Row-flattened channels-last view (free layout plumbing on a tiny tensor).
    # TODO(synk): if the surrounding model consumes NHWC, keep this layout end
    # to end and drop both transposes (they cost about as much as the kernel).
    x_rows = jnp.transpose(x_nchw, (0, 2, 3, 1)).reshape(B, H, W * Cin)

    flops = 2 * B * H * (K * W * Cin * W * C4 + W * C4 * W * Cout)
    bytes_accessed = (p["Mflat"].size * 2 + p["BD"].size * 2
                      + (p["bcat_row"].size + p["bf_row"].size) * 4
                      + x_rows.size * 4 + B * H * W * Cout * 4)

    kern = functools.partial(msfem_kernel, B=B, H=H, W=W, Cin=Cin, K=K)
    out_rows = pl.pallas_call(
        kern,
        out_shape=jax.ShapeDtypeStruct((B, H, W * Cout), x_nchw.dtype),
        grid=(1,),
        in_specs=[
            pl.BlockSpec((B, H, W * Cin), lambda i: (0, 0, 0)),
            pl.BlockSpec((K * W * Cin, W * C4), lambda i: (0, 0)),
            pl.BlockSpec((1, W * C4), lambda i: (0, 0)),
            pl.BlockSpec((W * C4, W * Cout), lambda i: (0, 0)),
            pl.BlockSpec((1, W * Cout), lambda i: (0, 0)),
        ],
        out_specs=pl.BlockSpec((B, H, W * Cout), lambda i: (0, 0, 0)),
        scratch_shapes=[
            pltpu.VMEM((B, H + K - 1, W * Cin), jnp.float32),   # y-padded input
            pltpu.VMEM((B, H, K * W * Cin), jnp.bfloat16),      # stacked LHS
        ],
        compiler_params=pltpu.CompilerParams(
            dimension_semantics=("arbitrary",)),
        cost_estimate=pl.CostEstimate(flops=flops, transcendentals=0,
                                      bytes_accessed=bytes_accessed),
    )(x_rows, p["Mflat"], p["bcat_row"], p["BD"], p["bf_row"])

    return jnp.transpose(out_rows.reshape(B, H, W, Cout), (0, 3, 1, 2))


# ----------------------------------------------------------------------------
# Plain-JAX reference (exact conv semantics) for a correctness check.
# ----------------------------------------------------------------------------
def msfem_reference(x, raw):
    dn = ("NCHW", "OIHW", "NCHW")

    def conv(inp, w, pad, dil):
        return jax.lax.conv_general_dilated(
            inp, w, window_strides=(1, 1), padding=((pad, pad), (pad, pad)),
            rhs_dilation=(dil, dil), dimension_numbers=dn,
            precision=jax.lax.Precision.HIGHEST)

    def relu(t):
        return jnp.maximum(t, 0.0)

    f3 = relu(conv(x, raw["w3"], 1, 1) + raw["b3"][None, :, None, None])
    f5 = relu(conv(x, raw["w5"], 2, 1) + raw["b5"][None, :, None, None])
    f7 = relu(conv(x, raw["w7"], 3, 1) + raw["b7"][None, :, None, None])
    fd = relu(conv(x, raw["wd"], 2, 2) + raw["bd"][None, :, None, None])
    cat = jnp.concatenate([f3, f5, f7, fd], axis=1)
    return conv(cat, raw["wf"], 0, 1) + raw["bf"][None, :, None, None]


# ----------------------------------------------------------------------------
# Demo
# ----------------------------------------------------------------------------
if __name__ == "__main__":
    B, Cin, Cout, H, W = 2, 4, 8, 16, 16

    key = jax.random.PRNGKey(0)
    ks = jax.random.split(key, 12)
    rnd = lambda k, s: jax.random.normal(k, s, jnp.float32) * 0.05

    raw = dict(
        w3=rnd(ks[0], (Cout, Cin, 3, 3)), b3=rnd(ks[1], (Cout,)),
        w5=rnd(ks[2], (Cout, Cin, 5, 5)), b5=rnd(ks[3], (Cout,)),
        w7=rnd(ks[4], (Cout, Cin, 7, 7)), b7=rnd(ks[5], (Cout,)),
        wd=rnd(ks[6], (Cout, Cin, 3, 3)), bd=rnd(ks[7], (Cout,)),
        wf=rnd(ks[8], (Cout, 4 * Cout, 1, 1)), bf=rnd(ks[9], (Cout,)),
    )
    x = jax.random.normal(ks[10], (B, Cin, H, W), jnp.float32)

    params = prepare_msfem_params(raw, H, W)

    fwd = jax.jit(functools.partial(msfem_forward, Cout=Cout))
    out = fwd(x, params)
    jax.block_until_ready(out)

    assert out.shape == (B, Cout, H, W) and out.dtype == jnp.float32

    ref = msfem_reference(x, raw)
    max_err = float(jnp.max(jnp.abs(out - ref)))
    assert jnp.allclose(out, ref, atol=1e-2, rtol=1e-2), max_err

    print("KERNEL_OK")
</pallas_src>

<mosaic_0001>
module attributes {stable_mosaic.version = 11 : i64} {
  func.func @msfem_kernel(%arg0: i32, %arg1: memref<2x16x64xf32, #tpu.memory_space<vmem>>, %arg2: memref<448x512xbf16, #tpu.memory_space<vmem>>, %arg3: memref<1x512xf32, #tpu.memory_space<vmem>>, %arg4: memref<512x128xbf16, #tpu.memory_space<vmem>>, %arg5: memref<1x128xf32, #tpu.memory_space<vmem>>, %arg6: memref<2x16x128xf32, #tpu.memory_space<vmem>>, %arg7: memref<2x22x64xf32, #tpu.memory_space<vmem>>, %arg8: memref<2x16x448xbf16, #tpu.memory_space<vmem>>) attributes {dimension_semantics = [#tpu.dimension_semantics<arbitrary>], iteration_bounds = array<i64: 1>, scalar_prefetch = 0 : i64, scratch_operands = 2 : i64, tpu.core_type = #tpu.core_type<tc>, window_params = [{pipeline_mode = #tpu.pipeline_mode<synchronous>, transform_indices = @transform_0, window_bounds = array<i64: 2, 16, 64>}, {pipeline_mode = #tpu.pipeline_mode<synchronous>, transform_indices = @transform_1, window_bounds = array<i64: 448, 512>}, {pipeline_mode = #tpu.pipeline_mode<synchronous>, transform_indices = @transform_2, window_bounds = array<i64: 1, 512>}, {pipeline_mode = #tpu.pipeline_mode<synchronous>, transform_indices = @transform_3, window_bounds = array<i64: 512, 128>}, {pipeline_mode = #tpu.pipeline_mode<synchronous>, transform_indices = @transform_4, window_bounds = array<i64: 1, 128>}, {pipeline_mode = #tpu.pipeline_mode<synchronous>, transform_indices = @transform_5, window_bounds = array<i64: 2, 16, 128>}]} {
    %cst = arith.constant 0.000000e+00 : f32
    %0 = vector.broadcast %cst : f32 to vector<2x3x64xf32>
    %c0 = arith.constant 0 : index
    %c0_0 = arith.constant 0 : index
    %c0_1 = arith.constant 0 : index
    %1 = vector.load %arg7[%c0, %c0_0, %c0_1] : memref<2x22x64xf32, #tpu.memory_space<vmem>>, vector<2x3x64xf32>
    tpu.vector_store %arg7[%c0, %c0_0, %c0_1], %0 {strides = array<i32>} : memref<2x22x64xf32, #tpu.memory_space<vmem>>, vector<2x3x64xf32>,
    %cst_2 = arith.constant 0.000000e+00 : f32
    %2 = vector.broadcast %cst_2 : f32 to vector<2x3x64xf32>
    %c0_3 = arith.constant 0 : index
    %c19 = arith.constant 19 : index
    %c0_4 = arith.constant 0 : index
    %3 = vector.load %arg7[%c0_3, %c19, %c0_4] : memref<2x22x64xf32, #tpu.memory_space<vmem>>, vector<2x3x64xf32>
    tpu.vector_store %arg7[%c0_3, %c19, %c0_4], %2 {strides = array<i32>} : memref<2x22x64xf32, #tpu.memory_space<vmem>>, vector<2x3x64xf32>,
    %c0_5 = arith.constant 0 : index
    %c0_6 = arith.constant 0 : index
    %c0_7 = arith.constant 0 : index
    %4 = vector.load %arg1[%c0_5, %c0_6, %c0_7] : memref<2x16x64xf32, #tpu.memory_space<vmem>>, vector<2x16x64xf32>
    %c0_8 = arith.constant 0 : index
    %c3 = arith.constant 3 : index
    %c0_9 = arith.constant 0 : index
    %5 = vector.load %arg7[%c0_8, %c3, %c0_9] : memref<2x22x64xf32, #tpu.memory_space<vmem>>, vector<2x16x64xf32>
    tpu.vector_store %arg7[%c0_8, %c3, %c0_9], %4 {strides = array<i32>} : memref<2x22x64xf32, #tpu.memory_space<vmem>>, vector<2x16x64xf32>,
    %c0_10 = arith.constant 0 : index
    %c0_11 = arith.constant 0 : index
    %c0_12 = arith.constant 0 : index
    %6 = vector.load %arg7[%c0_10, %c0_11, %c0_12] : memref<2x22x64xf32, #tpu.memory_space<vmem>>, vector<2x16x64xf32>
    %7 = arith.truncf %6 : vector<2x16x64xf32> to vector<2x16x64xbf16>
    %c0_13 = arith.constant 0 : index
    %c0_14 = arith.constant 0 : index
    %c0_15 = arith.constant 0 : index
    %8 = vector.load %arg8[%c0_13, %c0_14, %c0_15] : memref<2x16x448xbf16, #tpu.memory_space<vmem>>, vector<2x16x64xbf16>
    tpu.vector_store %arg8[%c0_13, %c0_14, %c0_15], %7 {strides = array<i32>} : memref<2x16x448xbf16, #tpu.memory_space<vmem>>, vector<2x16x64xbf16>,
    %c0_16 = arith.constant 0 : index
    %c1 = arith.constant 1 : index
    %c0_17 = arith.constant 0 : index
    %9 = vector.load %arg7[%c0_16, %c1, %c0_17] : memref<2x22x64xf32, #tpu.memory_space<vmem>>, vector<2x16x64xf32>
    %10 = arith.truncf %9 : vector<2x16x64xf32> to vector<2x16x64xbf16>
    %c0_18 = arith.constant 0 : index
    %c0_19 = arith.constant 0 : index
    %c64 = arith.constant 64 : index
    %11 = vector.load %arg8[%c0_18, %c0_19, %c64] : memref<2x16x448xbf16, #tpu.memory_space<vmem>>, vector<2x16x64xbf16>
    tpu.vector_store %arg8[%c0_18, %c0_19, %c64], %10 {strides = array<i32>} : memref<2x16x448xbf16, #tpu.memory_space<vmem>>, vector<2x16x64xbf16>,
    %c0_20 = arith.constant 0 : index
    %c2 = arith.constant 2 : index
    %c0_21 = arith.constant 0 : index
    %12 = vector.load %arg7[%c0_20, %c2, %c0_21] : memref<2x22x64xf32, #tpu.memory_space<vmem>>, vector<2x16x64xf32>
    %13 = arith.truncf %12 : vector<2x16x64xf32> to vector<2x16x64xbf16>
    %c0_22 = arith.constant 0 : index
    %c0_23 = arith.constant 0 : index
    %c128 = arith.constant 128 : index
    %14 = vector.load %arg8[%c0_22, %c0_23, %c128] : memref<2x16x448xbf16, #tpu.memory_space<vmem>>, vector<2x16x64xbf16>
    tpu.vector_store %arg8[%c0_22, %c0_23, %c128], %13 {strides = array<i32>} : memref<2x16x448xbf16, #tpu.memory_space<vmem>>, vector<2x16x64xbf16>,
    %c0_24 = arith.constant 0 : index
    %c3_25 = arith.constant 3 : index
    %c0_26 = arith.constant 0 : index
    %15 = vector.load %arg7[%c0_24, %c3_25, %c0_26] : memref<2x22x64xf32, #tpu.memory_space<vmem>>, vector<2x16x64xf32>
    %16 = arith.truncf %15 : vector<2x16x64xf32> to vector<2x16x64xbf16>
    %c0_27 = arith.constant 0 : index
    %c0_28 = arith.constant 0 : index
    %c192 = arith.constant 192 : index
    %17 = vector.load %arg8[%c0_27, %c0_28, %c192] : memref<2x16x448xbf16, #tpu.memory_space<vmem>>, vector<2x16x64xbf16>
    tpu.vector_store %arg8[%c0_27, %c0_28, %c192], %16 {strides = array<i32>} : memref<2x16x448xbf16, #tpu.memory_space<vmem>>, vector<2x16x64xbf16>,
    %c0_29 = arith.constant 0 : index
    %c4 = arith.constant 4 : index
    %c0_30 = arith.constant 0 : index
    %18 = vector.load %arg7[%c0_29, %c4, %c0_30] : memref<2x22x64xf32, #tpu.memory_space<vmem>>, vector<2x16x64xf32>
    %19 = arith.truncf %18 : vector<2x16x64xf32> to vector<2x16x64xbf16>
    %c0_31 = arith.constant 0 : index
    %c0_32 = arith.constant 0 : index
    %c256 = arith.constant 256 : index
    %20 = vector.load %arg8[%c0_31, %c0_32, %c256] : memref<2x16x448xbf16, #tpu.memory_space<vmem>>, vector<2x16x64xbf16>
    tpu.vector_store %arg8[%c0_31, %c0_32, %c256], %19 {strides = array<i32>} : memref<2x16x448xbf16, #tpu.memory_space<vmem>>, vector<2x16x64xbf16>,
    %c0_33 = arith.constant 0 : index
    %c5 = arith.constant 5 : index
    %c0_34 = arith.constant 0 : index
    %21 = vector.load %arg7[%c0_33, %c5, %c0_34] : memref<2x22x64xf32, #tpu.memory_space<vmem>>, vector<2x16x64xf32>
    %22 = arith.truncf %21 : vector<2x16x64xf32> to vector<2x16x64xbf16>
    %c0_35 = arith.constant 0 : index
    %c0_36 = arith.constant 0 : index
    %c320 = arith.constant 320 : index
    %23 = vector.load %arg8[%c0_35, %c0_36, %c320] : memref<2x16x448xbf16, #tpu.memory_space<vmem>>, vector<2x16x64xbf16>
    tpu.vector_store %arg8[%c0_35, %c0_36, %c320], %22 {strides = array<i32>} : memref<2x16x448xbf16, #tpu.memory_space<vmem>>, vector<2x16x64xbf16>,
    %c0_37 = arith.constant 0 : index
    %c6 = arith.constant 6 : index
    %c0_38 = arith.constant 0 : index
    %24 = vector.load %arg7[%c0_37, %c6, %c0_38] : memref<2x22x64xf32, #tpu.memory_space<vmem>>, vector<2x16x64xf32>
    %25 = arith.truncf %24 : vector<2x16x64xf32> to vector<2x16x64xbf16>
    %c0_39 = arith.constant 0 : index
    %c0_40 = arith.constant 0 : index
    %c384 = arith.constant 384 : index
    %26 = vector.load %arg8[%c0_39, %c0_40, %c384] : memref<2x16x448xbf16, #tpu.memory_space<vmem>>, vector<2x16x64xbf16>
    tpu.vector_store %arg8[%c0_39, %c0_40, %c384], %25 {strides = array<i32>} : memref<2x16x448xbf16, #tpu.memory_space<vmem>>, vector<2x16x64xbf16>,
    %c0_41 = arith.constant 0 : index
    %c0_42 = arith.constant 0 : index
    %c0_43 = arith.constant 0 : index
    %27 = vector.load %arg8[%c0_41, %c0_42, %c0_43] : memref<2x16x448xbf16, #tpu.memory_space<vmem>>, vector<2x16x448xbf16>
    %28 = vector.shape_cast %27 : vector<2x16x448xbf16> to vector<32x448xbf16>
    %c0_44 = arith.constant 0 : index
    %c0_45 = arith.constant 0 : index
    %29 = vector.load %arg2[%c0_44, %c0_45] : memref<448x512xbf16, #tpu.memory_space<vmem>>, vector<448x512xbf16>
    %cst_46 = arith.constant dense<0.000000e+00> : vector<32x512xf32>
    %30 = tpu.matmul %28, %29, %cst_46 {dimension_numbers = #tpu.dot_dimension_numbers<[1], [0], [0], [1], [0, 0, 1, 1], [], []>} : vector<32x448xbf16>, vector<448x512xbf16>, vector<32x512xf32> -> vector<32x512xf32>
    %c0_47 = arith.constant 0 : index
    %c0_48 = arith.constant 0 : index
    %31 = vector.load %arg3[%c0_47, %c0_48] : memref<1x512xf32, #tpu.memory_space<vmem>>, vector<1x512xf32>
    %32 = vector.broadcast %31 : vector<1x512xf32> to vector<32x512xf32>
    %33 = arith.addf %30, %32 : vector<32x512xf32>
    %cst_49 = arith.constant 0.000000e+00 : f32
    %34 = vector.broadcast %cst_49 : f32 to vector<32x512xf32>
    %35 = arith.maximumf %33, %34 : vector<32x512xf32>
    %36 = arith.truncf %35 : vector<32x512xf32> to vector<32x512xbf16>
    %c0_50 = arith.constant 0 : index
    %c0_51 = arith.constant 0 : index
    %37 = vector.load %arg4[%c0_50, %c0_51] : memref<512x128xbf16, #tpu.memory_space<vmem>>, vector<512x128xbf16>
    %cst_52 = arith.constant dense<0.000000e+00> : vector<32x128xf32>
    %38 = tpu.matmul %36, %37, %cst_52 {dimension_numbers = #tpu.dot_dimension_numbers<[1], [0], [0], [1], [0, 0, 1, 1], [], []>} : vector<32x512xbf16>, vector<512x128xbf16>, vector<32x128xf32> -> vector<32x128xf32>
    %c0_53 = arith.constant 0 : index
    %c0_54 = arith.constant 0 : index
    %39 = vector.load %arg5[%c0_53, %c0_54] : memref<1x128xf32, #tpu.memory_space<vmem>>, vector<1x128xf32>
    %40 = vector.broadcast %39 : vector<1x128xf32> to vector<32x128xf32>
    %41 = arith.addf %38, %40 : vector<32x128xf32>
    %42 = vector.shape_cast %41 : vector<32x128xf32> to vector<2x16x128xf32>
    %c0_55 = arith.constant 0 : index
    %c0_56 = arith.constant 0 : index
    %c0_57 = arith.constant 0 : index
    %43 = vector.load %arg6[%c0_55, %c0_56, %c0_57] : memref<2x16x128xf32, #tpu.memory_space<vmem>>, vector<2x16x128xf32>
    tpu.vector_store %arg6[%c0_55, %c0_56, %c0_57], %42 {strides = array<i32>} : memref<2x16x128xf32, #tpu.memory_space<vmem>>, vector<2x16x128xf32>,
    return
  }
  func.func @transform_0(%arg0: i32) -> (i32, i32, i32) {
    %c0_i32 = arith.constant 0 : i32
    %c0_i32_0 = arith.constant 0 : i32
    %c0_i32_1 = arith.constant 0 : i32
    %c0_i32_2 = arith.constant 0 : i32
    return %c0_i32, %c0_i32_0, %c0_i32_1 : i32, i32, i32
  }
  func.func @transform_1(%arg0: i32) -> (i32, i32) {
    %c0_i32 = arith.constant 0 : i32
    %c0_i32_0 = arith.constant 0 : i32
    %c0_i32_1 = arith.constant 0 : i32
    return %c0_i32, %c0_i32_0 : i32, i32
  }
  func.func @transform_2(%arg0: i32) -> (i32, i32) {
    %c0_i32 = arith.constant 0 : i32
    %c0_i32_0 = arith.constant 0 : i32
    %c0_i32_1 = arith.constant 0 : i32
    return %c0_i32, %c0_i32_0 : i32, i32
  }
  func.func @transform_3(%arg0: i32) -> (i32, i32) {
    %c0_i32 = arith.constant 0 : i32
    %c0_i32_0 = arith.constant 0 : i32
    %c0_i32_1 = arith.constant 0 : i32
    return %c0_i32, %c0_i32_0 : i32, i32
  }
  func.func @transform_4(%arg0: i32) -> (i32, i32) {
    %c0_i32 = arith.constant 0 : i32
    %c0_i32_0 = arith.constant 0 : i32
    %c0_i32_1 = arith.constant 0 : i32
    return %c0_i32, %c0_i32_0 : i32, i32
  }
  func.func @transform_5(%arg0: i32) -> (i32, i32, i32) {
    %c0_i32 = arith.constant 0 : i32
    %c0_i32_0 = arith.constant 0 : i32
    %c0_i32_1 = arith.constant 0 : i32
    %c0_i32_2 = arith.constant 0 : i32
    return %c0_i32, %c0_i32_0, %c0_i32_1 : i32, i32, i32
  }
}

</mosaic_0001>

<llo_original>
// kernel: msfem_forward.1
$region0: #{msfem_forward.1}
  #allocation0 [shape = 'u32[]', space=smem, size = 0x4, offset = 0x4, fixed_abs, tag = 'smem constant byte address 0x4 - core index']
  #allocation1 [shape = 'u32[144,128]{1,0:T(1,128)}', space=vmem, size = 0x12000, scoped, tag = 'internal scratch']
  #allocation2 [shape = 'f32[2,22,64]{2,1,0:T(8,128)}', space=vmem, size = 0x6000, scoped, tag = 'scratch operand']
  #allocation3 [shape = 'bf16[2,16,448]{2,1,0:T(8,128)(2,1)}', space=vmem, size = 0x8000, scoped, tag = 'scratch operand']
  %s0 = inlined_call_operand.vmem [shape: f32[2,16,64], index: 0, kind: input, shape index: {}]
  %s1 = inlined_call_operand.hbm [shape: bf16[448,512], index: 1, kind: input, shape index: {}]
  %s2 = inlined_call_operand.vmem [shape: f32[1,512], index: 2, kind: input, shape index: {}]
  %s3 = inlined_call_operand.vmem [shape: bf16[512,128], index: 3, kind: input, shape index: {}]
  %s4 = inlined_call_operand.vmem [shape: f32[1,128], index: 4, kind: input, shape index: {}]
  %s5 = inlined_call_operand.vmem [shape: f32[2,16,128], index: 5, kind: output, shape index: {}]
  %s6 = sld [smem:[#allocation0]]
  $region34: #{msfem_forward.1} parent=0
    _
  %s8 = ssub.s32 1, %s6
  %s9 = scalar_select 0, %s8, %s6
  $region1: #{msfem_forward.1} parent=0
    #allocation4 [shape = 'u8[458752]{0}', space=vmem, size = 0x70000, scoped, tag = 'input window, operand 1, single buffered']
    #allocation5 [shape = 's32[1]{0}', space=sflag, size = 0x4, scoped, tag = 'scoped memory for msfem_forward.1']
    %10 = vsyncpa [#allocation5], 0
    // Predicated region
    $region2: #{msfem_forward.1} parent=1 // pred_check
      _
    $region3: #{msfem_forward.1} parent=1 // pred_check_branch
      %12 = sbr.rel (0) target = $region5
    $region4: #{msfem_forward.1} parent=1 // pred_region
      _
    $region5: #{msfem_forward.1} parent=1 // pred_fallthru
      _
    // Predicated region
    $region6: #{msfem_forward.1} parent=1 // pred_check
      _
    $region7: #{msfem_forward.1} parent=1 // pred_check_branch
      %14 = sbr.rel (0) target = $region9
    $region8: #{msfem_forward.1} parent=1 // pred_region
      %s16 = ssub.s32 14336, 14336
      %17 = vsyncadd [#allocation5], %s16
      %s18 = sshll.u32 [#allocation4], 4
      %s19 = int_to_ptr.vmem [resolvable:$true] %s18
      %24 = dma.hbm_to_vmem [thread:$0]  %s1, 14336, %s19, [#allocation5], 256, 256, 16
    $region9: #{msfem_forward.1} parent=1 // pred_fallthru
      _
    // Predicated region
    $region10: #{msfem_forward.1} parent=1 // pred_check
      _
    $region11: #{msfem_forward.1} parent=1 // pred_check_branch
      %26 = sbr.rel (0) target = $region13
    $region12: #{msfem_forward.1} parent=1 // pred_region
      _
    $region13: #{msfem_forward.1} parent=1 // pred_fallthru
      _
    // Predicated region
    $region14: #{msfem_forward.1} parent=1 // pred_check
      _
    $region15: #{msfem_forward.1} parent=1 // pred_check_branch
      %28 = sbr.rel (0) target = $region17
    $region16: #{msfem_forward.1} parent=1 // pred_region
      _
    $region17: #{msfem_forward.1} parent=1 // pred_fallthru
      _
    // Predicated region
    $region18: #{msfem_forward.1} parent=1 // pred_check
      _
    $region19: #{msfem_forward.1} parent=1 // pred_check_branch
      %30 = sbr.rel (0) target = $region21
    $region20: #{msfem_forward.1} parent=1 // pred_region
      _
    $region21: #{msfem_forward.1} parent=1 // pred_fallthru
      _
    // Predicated region
    $region22: #{msfem_forward.1} parent=1 // pred_check
      _
    $region23: #{msfem_forward.1} parent=1 // pred_check_branch
      %32 = sbr.rel (0) target = $region25
    $region24: #{msfem_forward.1} parent=1 // pred_region
      %33 = dma.done [#allocation5], 14336
    $region25: #{msfem_forward.1} parent=1 // pred_fallthru
      _
    %vm35 = vcmask 518144
    %36 = vst.msk [vmem:[#allocation2] sm:$0x7] %vm35, 0.0
    %37 = vst.msk [vmem:[#allocation2 + $0x18] sm:$0x7] %vm35, 0.0
    %38 = vst.msk [vmem:[#allocation2 + $0x13] sm:$0x7] %vm35, 0.0
    %39 = vst.msk [vmem:[#allocation2 + $0x2b] sm:$0x7] %vm35, 0.0
    %v40 = vld [vmem:[%s0] sm:$0xff]
    %v41 = vld [vmem:[%s0 + $0x8] sm:$0xff]
    %v42 = vld [vmem:[%s0 + $0x10] sm:$0xff]
    %v43 = vld [vmem:[%s0 + $0x18] sm:$0xff]
    %vm44 = vcmask 523264
    %45 = vst.msk [vmem:[#allocation2 + $0x3] sm:$0xff] %vm44, %v40
    %46 = vst.msk [vmem:[#allocation2 + $0xb] sm:$0xff] %vm44, %v41
    %47 = vst.msk [vmem:[#allocation2 + $0x1b] sm:$0xff] %vm44, %v42
    %48 = vst.msk [vmem:[#allocation2 + $0x23] sm:$0xff] %vm44, %v43
    %v49 = vld [vmem:[#allocation2] sm:$0xff]
    %v50 = vld [vmem:[#allocation2 + $0x8] sm:$0xff]
    %v51 = vld [vmem:[#allocation2 + $0x18] sm:$0xff]
    %v52 = vld [vmem:[#allocation2 + $0x20] sm:$0xff]
    %v53 = vpack.c.bf16 %v50, %v49
    %v54 = vpack.c.bf16 %v52, %v51
    %v57 = vunpack.c.l.b16 %v53
    %v58 = vunpack.c.h.b16 %v53
    %v59 = vunpack.c.l.b16 %v54
    %v60 = vunpack.c.h.b16 %v54
    %v61 = vpack.c.b16 %v57, %v57
    %v62 = vpack.c.b16 %v58, %v58
    %v63 = vpack.c.b16 %v59, %v59
    %v64 = vpack.c.b16 %v60, %v60
    %vm69 = vcmask 519168
    %70 = vst.msk [vmem:[#allocation3] sm:$0xf] %vm69, %v61
    %71 = vst.msk [vmem:[#allocation3 + $0x10] sm:$0xf] %vm69, %v62
    %72 = vst.msk [vmem:[#allocation3 + $0x20] sm:$0xf] %vm69, %v63
    %73 = vst.msk [vmem:[#allocation3 + $0x30] sm:$0xf] %vm69, %v64
    %v74 = vld [vmem:[#allocation2 + $0x1] sm:$0xff]
    %v75 = vld [vmem:[#allocation2 + $0x9] sm:$0xff]
    %v76 = vld [vmem:[#allocation2 + $0x19] sm:$0xff]
    %v77 = vld [vmem:[#allocation2 + $0x21] sm:$0xff]
    %v78 = vpack.c.bf16 %v75, %v74
    %v79 = vpack.c.bf16 %v77, %v76
    %v82 = vunpack.c.l.b16 %v78
    %v83 = vunpack.c.h.b16 %v78
    %v84 = vunpack.c.l.b16 %v79
    %v85 = vunpack.c.h.b16 %v79
    %v86 = vpack.c.b16 %v82, %v82
    %v87 = vpack.c.b16 %v83, %v83
    %v88 = vpack.c.b16 %v84, %v84
    %v89 = vpack.c.b16 %v85, %v85
    %90 = vrot.lane.b32.xlu0 %v86, 64
    %v91 = vpop.permute.xlu0 %90
    %92 = vrot.lane.b32.xlu0 %v87, 64
    %v93 = vpop.permute.xlu0 %92
    %94 = vrot.lane.b32.xlu0 %v88, 64
    %v95 = vpop.permute.xlu0 %94
    %96 = vrot.lane.b32.xlu0 %v89, 64
    %v97 = vpop.permute.xlu0 %96
    %vm102 = vcmask 1043968
    %103 = vst.msk [vmem:[#allocation3] sm:$0xf] %vm102, %v91
    %104 = vst.msk [vmem:[#allocation3 + $0x10] sm:$0xf] %vm102, %v93
    %105 = vst.msk [vmem:[#allocation3 + $0x20] sm:$0xf] %vm102, %v95
    %106 = vst.msk [vmem:[#allocation3 + $0x30] sm:$0xf] %vm102, %v97
    %v107 = vld [vmem:[#allocation2 + $0x2] sm:$0xff]
    %v108 = vld [vmem:[#allocation2 + $0xa] sm:$0xff]
    %v109 = vld [vmem:[#allocation2 + $0x1a] sm:$0xff]
    %v110 = vld [vmem:[#allocation2 + $0x22] sm:$0xff]
    %v111 = vpack.c.bf16 %v108, %v107
    %v112 = vpack.c.bf16 %v110, %v109
    %v115 = vunpack.c.l.b16 %v111
    %v116 = vunpack.c.h.b16 %v111
    %v117 = vunpack.c.l.b16 %v112
    %v118 = vunpack.c.h.b16 %v112
    %v119 = vpack.c.b16 %v115, %v115
    %v120 = vpack.c.b16 %v116, %v116
    %v121 = vpack.c.b16 %v117, %v117
    %v122 = vpack.c.b16 %v118, %v118
    %127 = vst.msk [vmem:[#allocation3 + $0x4] sm:$0xf] %vm69, %v119
    %128 = vst.msk [vmem:[#allocation3 + $0x14] sm:$0xf] %vm69, %v120
    %129 = vst.msk [vmem:[#allocation3 + $0x24] sm:$0xf] %vm69, %v121
    %130 = vst.msk [vmem:[#allocation3 + $0x34] sm:$0xf] %vm69, %v122
    %v131 = vld [vmem:[#allocation2 + $0x3] sm:$0xff]
    %v132 = vld [vmem:[#allocation2 + $0xb] sm:$0xff]
    %v133 = vld [vmem:[#allocation2 + $0x1b] sm:$0xff]
    %v134 = vld [vmem:[#allocation2 + $0x23] sm:$0xff]
    %v135 = vpack.c.bf16 %v132, %v131
    %v136 = vpack.c.bf16 %v134, %v133
    %v139 = vunpack.c.l.b16 %v135
    %v140 = vunpack.c.h.b16 %v135
    %v141 = vunpack.c.l.b16 %v136
    %v142 = vunpack.c.h.b16 %v136
    %v143 = vpack.c.b16 %v139, %v139
    %v144 = vpack.c.b16 %v140, %v140
    %v145 = vpack.c.b16 %v141, %v141
    %v146 = vpack.c.b16 %v142, %v142
    %147 = vrot.lane.b32.xlu0 %v143, 64
    %v148 = vpop.permute.xlu0 %147
    %149 = vrot.lane.b32.xlu0 %v144, 64
    %v150 = vpop.permute.xlu0 %149
    %151 = vrot.lane.b32.xlu0 %v145, 64
    %v152 = vpop.permute.xlu0 %151
    %153 = vrot.lane.b32.xlu0 %v146, 64
    %v154 = vpop.permute.xlu0 %153
    %159 = vst.msk [vmem:[#allocation3 + $0x4] sm:$0xf] %vm102, %v148
    %160 = vst.msk [vmem:[#allocation3 + $0x14] sm:$0xf] %vm102, %v150
    %161 = vst.msk [vmem:[#allocation3 + $0x24] sm:$0xf] %vm102, %v152
    %162 = vst.msk [vmem:[#allocation3 + $0x34] sm:$0xf] %vm102, %v154
    %v163 = vld [vmem:[#allocation2 + $0x4] sm:$0xff]
    %v164 = vld [vmem:[#allocation2 + $0xc] sm:$0xff]
    %v165 = vld [vmem:[#allocation2 + $0x1c] sm:$0xff]
    %v166 = vld [vmem:[#allocation2 + $0x24] sm:$0xff]
    %v167 = vpack.c.bf16 %v164, %v163
    %v168 = vpack.c.bf16 %v166, %v165
    %v171 = vunpack.c.l.b16 %v167
    %v172 = vunpack.c.h.b16 %v167
    %v173 = vunpack.c.l.b16 %v168
    %v174 = vunpack.c.h.b16 %v168
    %v175 = vpack.c.b16 %v171, %v171
    %v176 = vpack.c.b16 %v172, %v172
    %v177 = vpack.c.b16 %v173, %v173
    %v178 = vpack.c.b16 %v174, %v174
    %183 = vst.msk [vmem:[#allocation3 + $0x8] sm:$0xf] %vm69, %v175
    %184 = vst.msk [vmem:[#allocation3 + $0x18] sm:$0xf] %vm69, %v176
    %185 = vst.msk [vmem:[#allocation3 + $0x28] sm:$0xf] %vm69, %v177
    %186 = vst.msk [vmem:[#allocation3 + $0x38] sm:$0xf] %vm69, %v178
    %v187 = vld [vmem:[#allocation2 + $0x5] sm:$0xff]
    %v188 = vld [vmem:[#allocation2 + $0xd] sm:$0xff]
    %v189 = vld [vmem:[#allocation2 + $0x1d] sm:$0xff]
    %v190 = vld [vmem:[#allocation2 + $0x25] sm:$0xff]
    %v191 = vpack.c.bf16 %v188, %v187
    %v192 = vpack.c.bf16 %v190, %v189
    %v195 = vunpack.c.l.b16 %v191
    %v196 = vunpack.c.h.b16 %v191
    %v197 = vunpack.c.l.b16 %v192
    %v198 = vunpack.c.h.b16 %v192
    %v199 = vpack.c.b16 %v195, %v195
    %v200 = vpack.c.b16 %v196, %v196
    %v201 = vpack.c.b16 %v197, %v197
    %v202 = vpack.c.b16 %v198, %v198
    %203 = vrot.lane.b32.xlu0 %v199, 64
    %v204 = vpop.permute.xlu0 %203
    %205 = vrot.lane.b32.xlu0 %v200, 64
    %v206 = vpop.permute.xlu0 %205
    %207 = vrot.lane.b32.xlu0 %v201, 64
    %v208 = vpop.permute.xlu0 %207
    %209 = vrot.lane.b32.xlu0 %v202, 64
    %v210 = vpop.permute.xlu0 %209
    %215 = vst.msk [vmem:[#allocation3 + $0x8] sm:$0xf] %vm102, %v204
    %216 = vst.msk [vmem:[#allocation3 + $0x18] sm:$0xf] %vm102, %v206
    %217 = vst.msk [vmem:[#allocation3 + $0x28] sm:$0xf] %vm102, %v208
    %218 = vst.msk [vmem:[#allocation3 + $0x38] sm:$0xf] %vm102, %v210
    %v219 = vld [vmem:[#allocation2 + $0x6] sm:$0xff]
    %v220 = vld [vmem:[#allocation2 + $0xe] sm:$0xff]
    %v221 = vld [vmem:[#allocation2 + $0x1e] sm:$0xff]
    %v222 = vld [vmem:[#allocation2 + $0x26] sm:$0xff]
    %v223 = vpack.c.bf16 %v220, %v219
    %v224 = vpack.c.bf16 %v222, %v221
    %v227 = vunpack.c.l.b16 %v223
    %v228 = vunpack.c.h.b16 %v223
    %v229 = vunpack.c.l.b16 %v224
    %v230 = vunpack.c.h.b16 %v224
    %v231 = vpack.c.b16 %v227, %v227
    %v232 = vpack.c.b16 %v228, %v228
    %v233 = vpack.c.b16 %v229, %v229
    %v234 = vpack.c.b16 %v230, %v230
    %239 = vst.msk [vmem:[#allocation3 + $0xc] sm:$0xf] %vm69, %v231
    %240 = vst.msk [vmem:[#allocation3 + $0x1c] sm:$0xf] %vm69, %v232
    %241 = vst.msk [vmem:[#allocation3 + $0x2c] sm:$0xf] %vm69, %v233
    %242 = vst.msk [vmem:[#allocation3 + $0x3c] sm:$0xf] %vm69, %v234
    %v243 = vld [vmem:[#allocation3] sm:$0xff]
    %v244 = vld [vmem:[#allocation3 + $0x8] sm:$0xff]
    %v245 = vld [vmem:[#allocation3 + $0x10] sm:$0xff]
    %v246 = vld [vmem:[#allocation3 + $0x18] sm:$0xff]
    %v247 = vld [vmem:[#allocation3 + $0x20] sm:$0xff]
    %v248 = vld [vmem:[#allocation3 + $0x28] sm:$0xff]
    %v249 = vld [vmem:[#allocation3 + $0x30] sm:$0xff]
    %v250 = vld [vmem:[#allocation3 + $0x38] sm:$0xff]
    %v251 = vld [vmem:[#allocation4] sm:$0xff]
    %v252 = vld [vmem:[#allocation4 + $0x8] sm:$0xff]
    %v253 = vld [vmem:[#allocation4 + $0x10] sm:$0xff]
    %v254 = vld [vmem:[#allocation4 + $0x18] sm:$0xff]
    %v255 = vld [vmem:[#allocation4 + $0x20] sm:$0xff]
    %v256 = vld [vmem:[#allocation4 + $0x28] sm:$0xff]
    %v257 = vld [vmem:[#allocation4 + $0x30] sm:$0xff]
    %v258 = vld [vmem:[#allocation4 + $0x38] sm:$0xff]
    %v259 = vld [vmem:[#allocation4 + $0x40] sm:$0xff]
    %v260 = vld [vmem:[#allocation4 + $0x48] sm:$0xff]
    %v261 = vld [vmem:[#allocation4 + $0x50] sm:$0xff]
    %v262 = vld [vmem:[#allocation4 + $0x58] sm:$0xff]
    %v263 = vld [vmem:[#allocation4 + $0x60] sm:$0xff]
    %v264 = vld [vmem:[#allocation4 + $0x68] sm:$0xff]
    %v265 = vld [vmem:[#allocation4 + $0x70] sm:$0xff]
    %v266 = vld [vmem:[#allocation4 + $0x78] sm:$0xff]
    %v267 = vld [vmem:[#allocation4 + $0x80] sm:$0xff]
    %v268 = vld [vmem:[#allocation4 + $0x88] sm:$0xff]
    %v269 = vld [vmem:[#allocation4 + $0x90] sm:$0xff]
    %v270 = vld [vmem:[#allocation4 + $0x98] sm:$0xff]
    %v271 = vld [vmem:[#allocation4 + $0xa0] sm:$0xff]
    %v272 = vld [vmem:[#allocation4 + $0xa8] sm:$0xff]
    %v273 = vld [vmem:[#allocation4 + $0xb0] sm:$0xff]
    %v274 = vld [vmem:[#allocation4 + $0xb8] sm:$0xff]
    %v275 = vld [vmem:[#allocation4 + $0xc0] sm:$0xff]
    %v276 = vld [vmem:[#allocation4 + $0xc8] sm:$0xff]
    %v277 = vld [vmem:[#allocation4 + $0xd0] sm:$0xff]
    %v278 = vld [vmem:[#allocation4 + $0xd8] sm:$0xff]
    %v279 = vld [vmem:[#allocation4 + $0xe0] sm:$0xff]
    %v280 = vld [vmem:[#allocation4 + $0xe8] sm:$0xff]
    %v281 = vld [vmem:[#allocation4 + $0xf0] sm:$0xff]
    %v282 = vld [vmem:[#allocation4 + $0xf8] sm:$0xff]
    %v283 = vld [vmem:[#allocation4 + $0x100] sm:$0xff]
    %v284 = vld [vmem:[#allocation4 + $0x108] sm:$0xff]
    %v285 = vld [vmem:[#allocation4 + $0x110] sm:$0xff]
    %v286 = vld [vmem:[#allocation4 + $0x118] sm:$0xff]
    %v287 = vld [vmem:[#allocation4 + $0x120] sm:$0xff]
    %v288 = vld [vmem:[#allocation4 + $0x128] sm:$0xff]
    %v289 = vld [vmem:[#allocation4 + $0x130] sm:$0xff]
    %v290 = vld [vmem:[#allocation4 + $0x138] sm:$0xff]
    %v291 = vld [vmem:[#allocation4 + $0x140] sm:$0xff]
    %v292 = vld [vmem:[#allocation4 + $0x148] sm:$0xff]
    %v293 = vld [vmem:[#allocation4 + $0x150] sm:$0xff]
    %v294 = vld [vmem:[#allocation4 + $0x158] sm:$0xff]
    %v295 = vld [vmem:[#allocation4 + $0x160] sm:$0xff]
    %v296 = vld [vmem:[#allocation4 + $0x168] sm:$0xff]
    %v297 = vld [vmem:[#allocation4 + $0x170] sm:$0xff]
    %v298 = vld [vmem:[#allocation4 + $0x178] sm:$0xff]
    %v299 = vld [vmem:[#allocation4 + $0x180] sm:$0xff]
    %v300 = vld [vmem:[#allocation4 + $0x188] sm:$0xff]
    %v301 = vld [vmem:[#allocation4 + $0x190] sm:$0xff]
    %v302 = vld [vmem:[#allocation4 + $0x198] sm:$0xff]
    %v303 = vld [vmem:[#allocation4 + $0x1a0] sm:$0xff]
    %v304 = vld [vmem:[#allocation4 + $0x1a8] sm:$0xff]
    %v305 = vld [vmem:[#allocation4 + $0x1b0] sm:$0xff]
    %v306 = vld [vmem:[#allocation4 + $0x1b8] sm:$0xff]
    %v307 = vld [vmem:[#allocation4 + $0x1c0] sm:$0xff]
    %v308 = vld [vmem:[#allocation4 + $0x1c8] sm:$0xff]
    %v309 = vld [vmem:[#allocation4 + $0x1d0] sm:$0xff]
    %v310 = vld [vmem:[#allocation4 + $0x1d8] sm:$0xff]
    %v311 = vld [vmem:[#allocation4 + $0x1e0] sm:$0xff]
    %v312 = vld [vmem:[#allocation4 + $0x1e8] sm:$0xff]
    %v313 = vld [vmem:[#allocation4 + $0x1f0] sm:$0xff]
    %v314 = vld [vmem:[#allocation4 + $0x1f8] sm:$0xff]
    %v315 = vld [vmem:[#allocation4 + $0x200] sm:$0xff]
    %v316 = vld [vmem:[#allocation4 + $0x208] sm:$0xff]
    %v317 = vld [vmem:[#allocation4 + $0x210] sm:$0xff]
    %v318 = vld [vmem:[#allocation4 + $0x218] sm:$0xff]
    %v319 = vld [vmem:[#allocation4 + $0x220] sm:$0xff]
    %v320 = vld [vmem:[#allocation4 + $0x228] sm:$0xff]
    %v321 = vld [vmem:[#allocation4 + $0x230] sm:$0xff]
    %v322 = vld [vmem:[#allocation4 + $0x238] sm:$0xff]
    %v323 = vld [vmem:[#allocation4 + $0x240] sm:$0xff]
    %v324 = vld [vmem:[#allocation4 + $0x248] sm:$0xff]
    %v325 = vld [vmem:[#allocation4 + $0x250] sm:$0xff]
    %v326 = vld [vmem:[#allocation4 + $0x258] sm:$0xff]
    %v327 = vld [vmem:[#allocation4 + $0x260] sm:$0xff]
    %v328 = vld [vmem:[#allocation4 + $0x268] sm:$0xff]
    %v329 = vld [vmem:[#allocation4 + $0x270] sm:$0xff]
    %v330 = vld [vmem:[#allocation4 + $0x278] sm:$0xff]
    %v331 = vld [vmem:[#allocation4 + $0x280] sm:$0xff]
    %v332 = vld [vmem:[#allocation4 + $0x288] sm:$0xff]
    %v333 = vld [vmem:[#allocation4 + $0x290] sm:$0xff]
    %v334 = vld [vmem:[#allocation4 + $0x298] sm:$0xff]
    %v335 = vld [vmem:[#allocation4 + $0x2a0] sm:$0xff]
    %v336 = vld [vmem:[#allocation4 + $0x2a8] sm:$0xff]
    %v337 = vld [vmem:[#allocation4 + $0x2b0] sm:$0xff]
    %v338 = vld [vmem:[#allocation4 + $0x2b8] sm:$0xff]
    %v339 = vld [vmem:[#allocation4 + $0x2c0] sm:$0xff]
    %v340 = vld [vmem:[#allocation4 + $0x2c8] sm:$0xff]
    %v341 = vld [vmem:[#allocation4 + $0x2d0] sm:$0xff]
    %v342 = vld [vmem:[#allocation4 + $0x2d8] sm:$0xff]
    %v343 = vld [vmem:[#allocation4 + $0x2e0] sm:$0xff]
    %v344 = vld [vmem:[#allocation4 + $0x2e8] sm:$0xff]
    %v345 = vld [vmem:[#allocation4 + $0x2f0] sm:$0xff]
    %v346 = vld [vmem:[#allocation4 + $0x2f8] sm:$0xff]
    %v347 = vld [vmem:[#allocation4 + $0x300] sm:$0xff]
    %v348 = vld [vmem:[#allocation4 + $0x308] sm:$0xff]
    %v349 = vld [vmem:[#allocation4 + $0x310] sm:$0xff]
    %v350 = vld [vmem:[#allocation4 + $0x318] sm:$0xff]
    %v351 = vld [vmem:[#allocation4 + $0x320] sm:$0xff]
    %v352 = vld [vmem:[#allocation4 + $0x328] sm:$0xff]
    %v353 = vld [vmem:[#allocation4 + $0x330] sm:$0xff]
    %v354 = vld [vmem:[#allocation4 + $0x338] sm:$0xff]
    %v355 = vld [vmem:[#allocation4 + $0x340] sm:$0xff]
    %v356 = vld [vmem:[#allocation4 + $0x348] sm:$0xff]
    %v357 = vld [vmem:[#allocation4 + $0x350] sm:$0xff]
    %v358 = vld [vmem:[#allocation4 + $0x358] sm:$0xff]
    %v359 = vld [vmem:[#allocation4 + $0x360] sm:$0xff]
    %v360 = vld [vmem:[#allocation4 + $0x368] sm:$0xff]
    %v361 = vld [vmem:[#allocation4 + $0x370] sm:$0xff]
    %v362 = vld [vmem:[#allocation4 + $0x378] sm:$0xff]
    %v363 = vld [vmem:[%s2] sm:$0xf]
    %v365 = vlaneseq
    %v366 = vshrl.u32 %v365, 7
    %v367 = vsub.s32 0, %v366
    %v368 = vrot.slane %v363, %v367
    %v369 = vlaneseq
    %v370 = vshrl.u32 %v369, 7
    %v371 = vsub.s32 1, %v370
    %v372 = vrot.slane %v363, %v371
    %v373 = vlaneseq
    %v374 = vshrl.u32 %v373, 7
    %v375 = vsub.s32 2, %v374
    %v376 = vrot.slane %v363, %v375
    %v377 = vlaneseq
    %v378 = vshrl.u32 %v377, 7
    %v379 = vsub.s32 3, %v378
    %v380 = vrot.slane %v363, %v379
    %v393 = vunpack.c.l.b16 %v243
    %v394 = vunpack.c.h.b16 %v243
    %v395 = vunpack.c.l.b16 %v244
    %v396 = vunpack.c.h.b16 %v244
    %v397 = vunpack.c.l.b16 %v245
    %v398 = vunpack.c.h.b16 %v245
    %v399 = vunpack.c.l.b16 %v246
    %v400 = vunpack.c.h.b16 %v246
    %v401 = vunpack.c.l.b16 %v247
    %v402 = vunpack.c.h.b16 %v247
    %v403 = vunpack.c.l.b16 %v248
    %v404 = vunpack.c.h.b16 %v248
    %v405 = vunpack.c.l.b16 %v249
    %v406 = vunpack.c.h.b16 %v249
    %v407 = vunpack.c.l.b16 %v250
    %v408 = vunpack.c.h.b16 %v250
    %v409 = vpack.c.b16 %v397, %v393
    %v410 = vpack.c.b16 %v398, %v394
    %v411 = vpack.c.b16 %v399, %v395
    %v412 = vpack.c.b16 %v400, %v396
    %v413 = vpack.c.b16 %v405, %v401
    %v414 = vpack.c.b16 %v406, %v402
    %v415 = vpack.c.b16 %v407, %v403
    %v416 = vpack.c.b16 %v408, %v404
    %v535 = vunpack.c.l.b16 %v251
    %v536 = vunpack.c.h.b16 %v251
    %v537 = vunpack.c.l.b16 %v252
    %v538 = vunpack.c.h.b16 %v252
    %v539 = vunpack.c.l.b16 %v253
    %v540 = vunpack.c.h.b16 %v253
    %v541 = vunpack.c.l.b16 %v254
    %v542 = vunpack.c.h.b16 %v254
    %v543 = vunpack.c.l.b16 %v255
    %v544 = vunpack.c.h.b16 %v255
    %v545 = vunpack.c.l.b16 %v256
    %v546 = vunpack.c.h.b16 %v256
    %v547 = vunpack.c.l.b16 %v257
    %v548 = vunpack.c.h.b16 %v257
    %v549 = vunpack.c.l.b16 %v258
    %v550 = vunpack.c.h.b16 %v258
    %v551 = vunpack.c.l.b16 %v259
    %v552 = vunpack.c.h.b16 %v259
    %v553 = vunpack.c.l.b16 %v260
    %v554 = vunpack.c.h.b16 %v260
    %v555 = vunpack.c.l.b16 %v261
    %v556 = vunpack.c.h.b16 %v261
    %v557 = vunpack.c.l.b16 %v262
    %v558 = vunpack.c.h.b16 %v262
    %v559 = vunpack.c.l.b16 %v263
    %v560 = vunpack.c.h.b16 %v263
    %v561 = vunpack.c.l.b16 %v264
    %v562 = vunpack.c.h.b16 %v264
    %v563 = vunpack.c.l.b16 %v265
    %v564 = vunpack.c.h.b16 %v265
    %v565 = vunpack.c.l.b16 %v266
    %v566 = vunpack.c.h.b16 %v266
    %v567 = vunpack.c.l.b16 %v267
    %v568 = vunpack.c.h.b16 %v267
    %v569 = vunpack.c.l.b16 %v268
    %v570 = vunpack.c.h.b16 %v268
    %v571 = vunpack.c.l.b16 %v269
    %v572 = vunpack.c.h.b16 %v269
    %v573 = vunpack.c.l.b16 %v270
    %v574 = vunpack.c.h.b16 %v270
    %v575 = vunpack.c.l.b16 %v271
    %v576 = vunpack.c.h.b16 %v271
    %v577 = vunpack.c.l.b16 %v272
    %v578 = vunpack.c.h.b16 %v272
    %v579 = vunpack.c.l.b16 %v273
    %v580 = vunpack.c.h.b16 %v273
    %v581 = vunpack.c.l.b16 %v274
    %v582 = vunpack.c.h.b16 %v274
    %v583 = vunpack.c.l.b16 %v275
    %v584 = vunpack.c.h.b16 %v275
    %v585 = vunpack.c.l.b16 %v276
    %v586 = vunpack.c.h.b16 %v276
    %v587 = vunpack.c.l.b16 %v277
    %v588 = vunpack.c.h.b16 %v277
    %v589 = vunpack.c.l.b16 %v278
    %v590 = vunpack.c.h.b16 %v278
    %v591 = vunpack.c.l.b16 %v279
    %v592 = vunpack.c.h.b16 %v279
    %v593 = vunpack.c.l.b16 %v280
    %v594 = vunpack.c.h.b16 %v280
    %v595 = vunpack.c.l.b16 %v281
    %v596 = vunpack.c.h.b16 %v281
    %v597 = vunpack.c.l.b16 %v282
    %v598 = vunpack.c.h.b16 %v282
    %v599 = vunpack.c.l.b16 %v283
    %v600 = vunpack.c.h.b16 %v283
    %v601 = vunpack.c.l.b16 %v284
    %v602 = vunpack.c.h.b16 %v284
    %v603 = vunpack.c.l.b16 %v285
    %v604 = vunpack.c.h.b16 %v285
    %v605 = vunpack.c.l.b16 %v286
    %v606 = vunpack.c.h.b16 %v286
    %v607 = vunpack.c.l.b16 %v287
    %v608 = vunpack.c.h.b16 %v287
    %v609 = vunpack.c.l.b16 %v288
    %v610 = vunpack.c.h.b16 %v288
    %v611 = vunpack.c.l.b16 %v289
    %v612 = vunpack.c.h.b16 %v289
    %v613 = vunpack.c.l.b16 %v290
    %v614 = vunpack.c.h.b16 %v290
    %v615 = vunpack.c.l.b16 %v291
    %v616 = vunpack.c.h.b16 %v291
    %v617 = vunpack.c.l.b16 %v292
    %v618 = vunpack.c.h.b16 %v292
    %v619 = vunpack.c.l.b16 %v293
    %v620 = vunpack.c.h.b16 %v293
    %v621 = vunpack.c.l.b16 %v294
    %v622 = vunpack.c.h.b16 %v294
    %v623 = vunpack.c.l.b16 %v295
    %v624 = vunpack.c.h.b16 %v295
    %v625 = vunpack.c.l.b16 %v296
    %v626 = vunpack.c.h.b16 %v296
    %v627 = vunpack.c.l.b16 %v297
    %v628 = vunpack.c.h.b16 %v297
    %v629 = vunpack.c.l.b16 %v298
    %v630 = vunpack.c.h.b16 %v298
    %v631 = vunpack.c.l.b16 %v299
    %v632 = vunpack.c.h.b16 %v299
    %v633 = vunpack.c.l.b16 %v300
    %v634 = vunpack.c.h.b16 %v300
    %v635 = vunpack.c.l.b16 %v301
    %v636 = vunpack.c.h.b16 %v301
    %v637 = vunpack.c.l.b16 %v302
    %v638 = vunpack.c.h.b16 %v302
    %v639 = vunpack.c.l.b16 %v303
    %v640 = vunpack.c.h.b16 %v303
    %v641 = vunpack.c.l.b16 %v304
    %v642 = vunpack.c.h.b16 %v304
    %v643 = vunpack.c.l.b16 %v305
    %v644 = vunpack.c.h.b16 %v305
    %v645 = vunpack.c.l.b16 %v306
    %v646 = vunpack.c.h.b16 %v306
    %v647 = vunpack.c.l.b16 %v307
    %v648 = vunpack.c.h.b16 %v307
    %v649 = vunpack.c.l.b16 %v308
    %v650 = vunpack.c.h.b16 %v308
    %v651 = vunpack.c.l.b16 %v309
    %v652 = vunpack.c.h.b16 %v309
    %v653 = vunpack.c.l.b16 %v310
    %v654 = vunpack.c.h.b16 %v310
    %v655 = vunpack.c.l.b16 %v311
    %v656 = vunpack.c.h.b16 %v311
    %v657 = vunpack.c.l.b16 %v312
    %v658 = vunpack.c.h.b16 %v312
    %v659 = vunpack.c.l.b16 %v313
    %v660 = vunpack.c.h.b16 %v313
    %v661 = vunpack.c.l.b16 %v314
    %v662 = vunpack.c.h.b16 %v314
    %v663 = vunpack.c.l.b16 %v315
    %v664 = vunpack.c.h.b16 %v315
    %v665 = vunpack.c.l.b16 %v316
    %v666 = vunpack.c.h.b16 %v316
    %v667 = vunpack.c.l.b16 %v317
    %v668 = vunpack.c.h.b16 %v317
    %v669 = vunpack.c.l.b16 %v318
    %v670 = vunpack.c.h.b16 %v318
    %v671 = vunpack.c.l.b16 %v319
    %v672 = vunpack.c.h.b16 %v319
    %v673 = vunpack.c.l.b16 %v320
    %v674 = vunpack.c.h.b16 %v320
    %v675 = vunpack.c.l.b16 %v321
    %v676 = vunpack.c.h.b16 %v321
    %v677 = vunpack.c.l.b16 %v322
    %v678 = vunpack.c.h.b16 %v322
    %v679 = vunpack.c.l.b16 %v323
    %v680 = vunpack.c.h.b16 %v323
    %v681 = vunpack.c.l.b16 %v324
    %v682 = vunpack.c.h.b16 %v324
    %v683 = vunpack.c.l.b16 %v325
    %v684 = vunpack.c.h.b16 %v325
    %v685 = vunpack.c.l.b16 %v326
    %v686 = vunpack.c.h.b16 %v326
    %v687 = vunpack.c.l.b16 %v327
    %v688 = vunpack.c.h.b16 %v327
    %v689 = vunpack.c.l.b16 %v328
    %v690 = vunpack.c.h.b16 %v328
    %v691 = vunpack.c.l.b16 %v329
    %v692 = vunpack.c.h.b16 %v329
    %v693 = vunpack.c.l.b16 %v330
    %v694 = vunpack.c.h.b16 %v330
    %v695 = vunpack.c.l.b16 %v331
    %v696 = vunpack.c.h.b16 %v331
    %v697 = vunpack.c.l.b16 %v332
    %v698 = vunpack.c.h.b16 %v332
    %v699 = vunpack.c.l.b16 %v333
    %v700 = vunpack.c.h.b16 %v333
    %v701 = vunpack.c.l.b16 %v334
    %v702 = vunpack.c.h.b16 %v334
    %v703 = vunpack.c.l.b16 %v335
    %v704 = vunpack.c.h.b16 %v335
    %v705 = vunpack.c.l.b16 %v336
    %v706 = vunpack.c.h.b16 %v336
    %v707 = vunpack.c.l.b16 %v337
    %v708 = vunpack.c.h.b16 %v337
    %v709 = vunpack.c.l.b16 %v338
    %v710 = vunpack.c.h.b16 %v338
    %v711 = vunpack.c.l.b16 %v339
    %v712 = vunpack.c.h.b16 %v339
    %v713 = vunpack.c.l.b16 %v340
    %v714 = vunpack.c.h.b16 %v340
    %v715 = vunpack.c.l.b16 %v341
    %v716 = vunpack.c.h.b16 %v341
    %v717 = vunpack.c.l.b16 %v342
    %v718 = vunpack.c.h.b16 %v342
    %v719 = vunpack.c.l.b16 %v343
    %v720 = vunpack.c.h.b16 %v343
    %v721 = vunpack.c.l.b16 %v344
    %v722 = vunpack.c.h.b16 %v344
    %v723 = vunpack.c.l.b16 %v345
    %v724 = vunpack.c.h.b16 %v345
    %v725 = vunpack.c.l.b16 %v346
    %v726 = vunpack.c.h.b16 %v346
    %v727 = vunpack.c.l.b16 %v347
    %v728 = vunpack.c.h.b16 %v347
    %v729 = vunpack.c.l.b16 %v348
    %v730 = vunpack.c.h.b16 %v348
    %v731 = vunpack.c.l.b16 %v349
    %v732 = vunpack.c.h.b16 %v349
    %v733 = vunpack.c.l.b16 %v350
    %v734 = vunpack.c.h.b16 %v350
    %v735 = vunpack.c.l.b16 %v351
    %v736 = vunpack.c.h.b16 %v351
    %v737 = vunpack.c.l.b16 %v352
    %v738 = vunpack.c.h.b16 %v352
    %v739 = vunpack.c.l.b16 %v353
    %v740 = vunpack.c.h.b16 %v353
    %v741 = vunpack.c.l.b16 %v354
    %v742 = vunpack.c.h.b16 %v354
    %v743 = vunpack.c.l.b16 %v355
    %v744 = vunpack.c.h.b16 %v355
    %v745 = vunpack.c.l.b16 %v356
    %v746 = vunpack.c.h.b16 %v356
    %v747 = vunpack.c.l.b16 %v357
    %v748 = vunpack.c.h.b16 %v357
    %v749 = vunpack.c.l.b16 %v358
    %v750 = vunpack.c.h.b16 %v358
    %v751 = vunpack.c.l.b16 %v359
    %v752 = vunpack.c.h.b16 %v359
    %v753 = vunpack.c.l.b16 %v360
    %v754 = vunpack.c.h.b16 %v360
    %v755 = vunpack.c.l.b16 %v361
    %v756 = vunpack.c.h.b16 %v361
    %v757 = vunpack.c.l.b16 %v362
    %v758 = vunpack.c.h.b16 %v362
    %v759 = vpack.c.b16 %v539, %v535
    %v760 = vpack.c.b16 %v540, %v536
    %v761 = vpack.c.b16 %v541, %v537
    %v762 = vpack.c.b16 %v542, %v538
    %v763 = vpack.c.b16 %v547, %v543
    %v764 = vpack.c.b16 %v548, %v544
    %v765 = vpack.c.b16 %v549, %v545
    %v766 = vpack.c.b16 %v550, %v546
    %v767 = vpack.c.b16 %v555, %v551
    %v768 = vpack.c.b16 %v556, %v552
    %v769 = vpack.c.b16 %v557, %v553
    %v770 = vpack.c.b16 %v558, %v554
    %v771 = vpack.c.b16 %v563, %v559
    %v772 = vpack.c.b16 %v564, %v560
    %v773 = vpack.c.b16 %v565, %v561
    %v774 = vpack.c.b16 %v566, %v562
    %v775 = vpack.c.b16 %v571, %v567
    %v776 = vpack.c.b16 %v572, %v568
    %v777 = vpack.c.b16 %v573, %v569
    %v778 = vpack.c.b16 %v574, %v570
    %v779 = vpack.c.b16 %v579, %v575
    %v780 = vpack.c.b16 %v580, %v576
    %v781 = vpack.c.b16 %v581, %v577
    %v782 = vpack.c.b16 %v582, %v578
    %v783 = vpack.c.b16 %v587, %v583
    %v784 = vpack.c.b16 %v588, %v584
    %v785 = vpack.c.b16 %v589, %v585
    %v786 = vpack.c.b16 %v590, %v586
    %v787 = vpack.c.b16 %v595, %v591
    %v788 = vpack.c.b16 %v596, %v592
    %v789 = vpack.c.b16 %v597, %v593
    %v790 = vpack.c.b16 %v598, %v594
    %v791 = vpack.c.b16 %v603, %v599
    %v792 = vpack.c.b16 %v604, %v600
    %v793 = vpack.c.b16 %v605, %v601
    %v794 = vpack.c.b16 %v606, %v602
    %v795 = vpack.c.b16 %v611, %v607
    %v796 = vpack.c.b16 %v612, %v608
    %v797 = vpack.c.b16 %v613, %v609
    %v798 = vpack.c.b16 %v614, %v610
    %v799 = vpack.c.b16 %v619, %v615
    %v800 = vpack.c.b16 %v620, %v616
    %v801 = vpack.c.b16 %v621, %v617
    %v802 = vpack.c.b16 %v622, %v618
    %v803 = vpack.c.b16 %v627, %v623
    %v804 = vpack.c.b16 %v628, %v624
    %v805 = vpack.c.b16 %v629, %v625
    %v806 = vpack.c.b16 %v630, %v626
    %v807 = vpack.c.b16 %v635, %v631
    %v808 = vpack.c.b16 %v636, %v632
    %v809 = vpack.c.b16 %v637, %v633
    %v810 = vpack.c.b16 %v638, %v634
    %v811 = vpack.c.b16 %v643, %v639
    %v812 = vpack.c.b16 %v644, %v640
    %v813 = vpack.c.b16 %v645, %v641
    %v814 = vpack.c.b16 %v646, %v642
    %v815 = vpack.c.b16 %v651, %v647
    %v816 = vpack.c.b16 %v652, %v648
    %v817 = vpack.c.b16 %v653, %v649
    %v818 = vpack.c.b16 %v654, %v650
    %v819 = vpack.c.b16 %v659, %v655
    %v820 = vpack.c.b16 %v660, %v656
    %v821 = vpack.c.b16 %v661, %v657
    %v822 = vpack.c.b16 %v662, %v658
    %v823 = vpack.c.b16 %v667, %v663
    %v824 = vpack.c.b16 %v668, %v664
    %v825 = vpack.c.b16 %v669, %v665
    %v826 = vpack.c.b16 %v670, %v666
    %v827 = vpack.c.b16 %v675, %v671
    %v828 = vpack.c.b16 %v676, %v672
    %v829 = vpack.c.b16 %v677, %v673
    %v830 = vpack.c.b16 %v678, %v674
    %v831 = vpack.c.b16 %v683, %v679
    %v832 = vpack.c.b16 %v684, %v680
    %v833 = vpack.c.b16 %v685, %v681
    %v834 = vpack.c.b16 %v686, %v682
    %v835 = vpack.c.b16 %v691, %v687
    %v836 = vpack.c.b16 %v692, %v688
    %v837 = vpack.c.b16 %v693, %v689
    %v838 = vpack.c.b16 %v694, %v690
    %v839 = vpack.c.b16 %v699, %v695
    %v840 = vpack.c.b16 %v700, %v696
    %v841 = vpack.c.b16 %v701, %v697
    %v842 = vpack.c.b16 %v702, %v698
    %v843 = vpack.c.b16 %v707, %v703
    %v844 = vpack.c.b16 %v708, %v704
    %v845 = vpack.c.b16 %v709, %v705
    %v846 = vpack.c.b16 %v710, %v706
    %v847 = vpack.c.b16 %v715, %v711
    %v848 = vpack.c.b16 %v716, %v712
    %v849 = vpack.c.b16 %v717, %v713
    %v850 = vpack.c.b16 %v718, %v714
    %v851 = vpack.c.b16 %v723, %v719
    %v852 = vpack.c.b16 %v724, %v720
    %v853 = vpack.c.b16 %v725, %v721
    %v854 = vpack.c.b16 %v726, %v722
    %v855 = vpack.c.b16 %v731, %v727
    %v856 = vpack.c.b16 %v732, %v728
    %v857 = vpack.c.b16 %v733, %v729
    %v858 = vpack.c.b16 %v734, %v730
    %v859 = vpack.c.b16 %v739, %v735
    %v860 = vpack.c.b16 %v740, %v736
    %v861 = vpack.c.b16 %v741, %v737
    %v862 = vpack.c.b16 %v742, %v738
    %v863 = vpack.c.b16 %v747, %v743
    %v864 = vpack.c.b16 %v748, %v744
    %v865 = vpack.c.b16 %v749, %v745
    %v866 = vpack.c.b16 %v750, %v746
    %v867 = vpack.c.b16 %v755, %v751
    %v868 = vpack.c.b16 %v756, %v752
    %v869 = vpack.c.b16 %v757, %v753
    %v870 = vpack.c.b16 %v758, %v754
    %v984 = vsel %vm44, %v412, 0
    %v987 = vsel %vm44, %v416, 0
    %989 = vmatprep.subr.bf16.mxu0 %v788
    %990 = vmatpush1.bf16.msra.mxu0 %v787
    %991 = vmatprep.subr.bf16.mxu0 %v784
    %992 = vmatpush1.bf16.msra.mxu0 %v783
    %993 = vmatprep.subr.bf16.mxu0 %v780
    %994 = vmatpush1.bf16.msra.mxu0 %v779
    %995 = vmatprep.subr.bf16.mxu0 %v776
    %996 = vmatpush1.bf16.msra.mxu0 %v775
    %997 = vmatprep.subr.bf16.mxu0 %v772
    %998 = vmatpush1.bf16.msra.mxu0 %v771
    %999 = vmatprep.subr.bf16.mxu0 %v768
    %1000 = vmatpush1.bf16.msra.mxu0 %v767
    %1001 = vmatprep.subr.bf16.mxu0 %v764
    %1002 = vmatpush1.bf16.msra.mxu0 %v763
    %1003 = vmatprep.subr.bf16.mxu0 %v760
    %1004 = vmatpush1.bf16.msra.mxu0 %v759
    %1005 = vmatprep.subr.bf16.mxu0 %v820
    %1006 = vmatpush2.bf16.msra.mxu0 %v819
    %1007 = vmatprep.subr.bf16.mxu0 %v816
    %1008 = vmatpush2.bf16.msra.mxu0 %v815
    %1009 = vmatprep.subr.bf16.mxu0 %v812
    %1010 = vmatpush2.bf16.msra.mxu0 %v811
    %1011 = vmatprep.subr.bf16.mxu0 %v808
    %1012 = vmatpush2.bf16.msra.mxu0 %v807
    %1013 = vmatprep.subr.bf16.mxu0 %v804
    %1014 = vmatpush2.bf16.msra.mxu0 %v803
    %1015 = vmatprep.subr.bf16.mxu0 %v800
    %1016 = vmatpush2.bf16.msra.mxu0 %v799
    %1017 = vmatprep.subr.bf16.mxu0 %v796
    %1018 = vmatpush2.bf16.msra.mxu0 %v795
    %1019 = vmatprep.subr.bf16.mxu0 %v792
    %1020 = vmatpush2.bf16.msra.mxu0 %v791
    %1021 = vmatprep.mubr.bf16.mxu0 %v410
    %1022 = vmatmul.mubr.bf16.gmra.mxu0 %v409
    %v1023 = vpop.f32.mrf.mxu0
    %v1024 = vadd.f32 %v368, %v1023
    %v1025 = vpop.f32.mrf.mxu0
    %v1026 = vadd.f32 %v372, %v1025
    %v1027 = vpop.f32.mrf.mxu0
    %v1028 = vadd.f32 %v368, %v1027
    %v1029 = vpop.f32.mrf.mxu0
    %v1030 = vadd.f32 %v372, %v1029
    %1031 = vmatprep.mubr.bf16.mxu0 %v414
    %1032 = vmatmul.mubr.bf16.gmra.mxu0 %v413
    %v1033 = vpop.f32.mrf.mxu0
    %v1034 = vadd.f32 %v368, %v1033
    %v1035 = vpop.f32.mrf.mxu0
    %v1036 = vadd.f32 %v372, %v1035
    %v1037 = vpop.f32.mrf.mxu0
    %v1038 = vadd.f32 %v368, %v1037
    %v1039 = vpop.f32.mrf.mxu0
    %v1040 = vadd.f32 %v372, %v1039
    %1041 = vdwg.mxu0
    %1042 = vmatprep.subr.bf16.mxu0 %v852
    %1043 = vmatpush1.bf16.msra.mxu0 %v851
    %1044 = vmatprep.subr.bf16.mxu0 %v848
    %1045 = vmatpush1.bf16.msra.mxu0 %v847
    %1046 = vmatprep.subr.bf16.mxu0 %v844
    %1047 = vmatpush1.bf16.msra.mxu0 %v843
    %1048 = vmatprep.subr.bf16.mxu0 %v840
    %1049 = vmatpush1.bf16.msra.mxu0 %v839
    %1050 = vmatprep.subr.bf16.mxu0 %v836
    %1051 = vmatpush1.bf16.msra.mxu0 %v835
    %1052 = vmatprep.subr.bf16.mxu0 %v832
    %1053 = vmatpush1.bf16.msra.mxu0 %v831
    %1054 = vmatprep.subr.bf16.mxu0 %v828
    %1055 = vmatpush1.bf16.msra.mxu0 %v827
    %1056 = vmatprep.subr.bf16.mxu0 %v824
    %1057 = vmatpush1.bf16.msra.mxu0 %v823
    %1058 = vmatprep.subr.bf16.mxu0 0
    %1059 = vmatpush2.bf16.msra.mxu0 0
    %1060 = vmatprep.subr.bf16.mxu0 0
    %1061 = vmatpush2.bf16.msra.mxu0 0
    %1062 = vmatprep.subr.bf16.mxu0 0
    %1063 = vmatpush2.bf16.msra.mxu0 0
    %1064 = vmatprep.subr.bf16.mxu0 0
    %1065 = vmatpush2.bf16.msra.mxu0 0
    %1066 = vmatprep.subr.bf16.mxu0 %v868
    %1067 = vmatpush2.bf16.msra.mxu0 %v867
    %1068 = vmatprep.subr.bf16.mxu0 %v864
    %1069 = vmatpush2.bf16.msra.mxu0 %v863
    %1070 = vmatprep.subr.bf16.mxu0 %v860
    %1071 = vmatpush2.bf16.msra.mxu0 %v859
    %1072 = vmatprep.subr.bf16.mxu0 %v856
    %1073 = vmatpush2.bf16.msra.mxu0 %v855
    %1074 = vmatprep.mubr.bf16.mxu0 %v984
    %1075 = vmatmul.mubr.bf16.gmra.mxu0 %v411
    %v1076 = vpop.f32.mrf.mxu0
    %v1077 = vadd.f32 %v1024, %v1076
    %v1078 = vpop.f32.mrf.mxu0
    %v1079 = vadd.f32 %v1026, %v1078
    %v1080 = vpop.f32.mrf.mxu0
    %v1081 = vadd.f32 %v1028, %v1080
    %v1082 = vpop.f32.mrf.mxu0
    %v1083 = vadd.f32 %v1030, %v1082
    %1084 = vmatprep.mubr.bf16.mxu0 %v987
    %1085 = vmatmul.mubr.bf16.gmra.mxu0 %v415
    %v1086 = vpop.f32.mrf.mxu0
    %v1087 = vadd.f32 %v1034, %v1086
    %v1088 = vpop.f32.mrf.mxu0
    %v1089 = vadd.f32 %v1036, %v1088
    %v1090 = vpop.f32.mrf.mxu0
    %v1091 = vadd.f32 %v1038, %v1090
    %v1092 = vpop.f32.mrf.mxu0
    %v1093 = vadd.f32 %v1040, %v1092
    %1094 = vdwg.mxu0
    %1095 = vmatprep.subr.bf16.mxu0 %v790
    %1096 = vmatpush1.bf16.msra.mxu0 %v789
    %1097 = vmatprep.subr.bf16.mxu0 %v786
    %1098 = vmatpush1.bf16.msra.mxu0 %v785
    %1099 = vmatprep.subr.bf16.mxu0 %v782
    %1100 = vmatpush1.bf16.msra.mxu0 %v781
    %1101 = vmatprep.subr.bf16.mxu0 %v778
    %1102 = vmatpush1.bf16.msra.mxu0 %v777
    %1103 = vmatprep.subr.bf16.mxu0 %v774
    %1104 = vmatpush1.bf16.msra.mxu0 %v773
    %1105 = vmatprep.subr.bf16.mxu0 %v770
    %1106 = vmatpush1.bf16.msra.mxu0 %v769
    %1107 = vmatprep.subr.bf16.mxu0 %v766
    %1108 = vmatpush1.bf16.msra.mxu0 %v765
    %1109 = vmatprep.subr.bf16.mxu0 %v762
    %1110 = vmatpush1.bf16.msra.mxu0 %v761
    %1111 = vmatprep.subr.bf16.mxu0 %v822
    %1112 = vmatpush2.bf16.msra.mxu0 %v821
    %1113 = vmatprep.subr.bf16.mxu0 %v818
    %1114 = vmatpush2.bf16.msra.mxu0 %v817
    %1115 = vmatprep.subr.bf16.mxu0 %v814
    %1116 = vmatpush2.bf16.msra.mxu0 %v813
    %1117 = vmatprep.subr.bf16.mxu0 %v810
    %1118 = vmatpush2.bf16.msra.mxu0 %v809
    %1119 = vmatprep.subr.bf16.mxu0 %v806
    %1120 = vmatpush2.bf16.msra.mxu0 %v805
    %1121 = vmatprep.subr.bf16.mxu0 %v802
    %1122 = vmatpush2.bf16.msra.mxu0 %v801
    %1123 = vmatprep.subr.bf16.mxu0 %v798
    %1124 = vmatpush2.bf16.msra.mxu0 %v797
    %1125 = vmatprep.subr.bf16.mxu0 %v794
    %1126 = vmatpush2.bf16.msra.mxu0 %v793
    %1127 = vmatprep.mubr.bf16.mxu0 %v410
    %1128 = vmatmul.mubr.bf16.gmra.mxu0 %v409
    %v1129 = vpop.f32.mrf.mxu0
    %v1130 = vadd.f32 %v376, %v1129
    %v1131 = vpop.f32.mrf.mxu0
    %v1132 = vadd.f32 %v380, %v1131
    %v1133 = vpop.f32.mrf.mxu0
    %v1134 = vadd.f32 %v376, %v1133
    %v1135 = vpop.f32.mrf.mxu0
    %v1136 = vadd.f32 %v380, %v1135
    %1137 = vmatprep.mubr.bf16.mxu0 %v414
    %1138 = vmatmul.mubr.bf16.gmra.mxu0 %v413
    %v1139 = vpop.f32.mrf.mxu0
    %v1140 = vadd.f32 %v376, %v1139
    %v1141 = vpop.f32.mrf.mxu0
    %v1142 = vadd.f32 %v380, %v1141
    %v1143 = vpop.f32.mrf.mxu0
    %v1144 = vadd.f32 %v376, %v1143
    %v1145 = vpop.f32.mrf.mxu0
    %v1146 = vadd.f32 %v380, %v1145
    %1147 = vdwg.mxu0
    %1148 = vmatprep.subr.bf16.mxu0 %v854
    %1149 = vmatpush1.bf16.msra.mxu0 %v853
    %1150 = vmatprep.subr.bf16.mxu0 %v850
    %1151 = vmatpush1.bf16.msra.mxu0 %v849
    %1152 = vmatprep.subr.bf16.mxu0 %v846
    %1153 = vmatpush1.bf16.msra.mxu0 %v845
    %1154 = vmatprep.subr.bf16.mxu0 %v842
    %1155 = vmatpush1.bf16.msra.mxu0 %v841
    %1156 = vmatprep.subr.bf16.mxu0 %v838
    %1157 = vmatpush1.bf16.msra.mxu0 %v837
    %1158 = vmatprep.subr.bf16.mxu0 %v834
    %1159 = vmatpush1.bf16.msra.mxu0 %v833
    %1160 = vmatprep.subr.bf16.mxu0 %v830
    %1161 = vmatpush1.bf16.msra.mxu0 %v829
    %1162 = vmatprep.subr.bf16.mxu0 %v826
    %1163 = vmatpush1.bf16.msra.mxu0 %v825
    %1164 = vmatprep.subr.bf16.mxu0 0
    %1165 = vmatpush2.bf16.msra.mxu0 0
    %1166 = vmatprep.subr.bf16.mxu0 0
    %1167 = vmatpush2.bf16.msra.mxu0 0
    %1168 = vmatprep.subr.bf16.mxu0 0
    %1169 = vmatpush2.bf16.msra.mxu0 0
    %1170 = vmatprep.subr.bf16.mxu0 0
    %1171 = vmatpush2.bf16.msra.mxu0 0
    %1172 = vmatprep.subr.bf16.mxu0 %v870
    %1173 = vmatpush2.bf16.msra.mxu0 %v869
    %1174 = vmatprep.subr.bf16.mxu0 %v866
    %1175 = vmatpush2.bf16.msra.mxu0 %v865
    %1176 = vmatprep.subr.bf16.mxu0 %v862
    %1177 = vmatpush2.bf16.msra.mxu0 %v861
    %1178 = vmatprep.subr.bf16.mxu0 %v858
    %1179 = vmatpush2.bf16.msra.mxu0 %v857
    %1180 = vmatprep.mubr.bf16.mxu0 %v984
    %1181 = vmatmul.mubr.bf16.gmra.mxu0 %v411
    %v1182 = vpop.f32.mrf.mxu0
    %v1183 = vadd.f32 %v1130, %v1182
    %v1184 = vpop.f32.mrf.mxu0
    %v1185 = vadd.f32 %v1132, %v1184
    %v1186 = vpop.f32.mrf.mxu0
    %v1187 = vadd.f32 %v1134, %v1186
    %v1188 = vpop.f32.mrf.mxu0
    %v1189 = vadd.f32 %v1136, %v1188
    %1190 = vmatprep.mubr.bf16.mxu0 %v987
    %1191 = vmatmul.mubr.bf16.gmra.mxu0 %v415
    %v1192 = vpop.f32.mrf.mxu0
    %v1193 = vadd.f32 %v1140, %v1192
    %v1194 = vpop.f32.mrf.mxu0
    %v1195 = vadd.f32 %v1142, %v1194
    %v1196 = vpop.f32.mrf.mxu0
    %v1197 = vadd.f32 %v1144, %v1196
    %v1198 = vpop.f32.mrf.mxu0
    %v1199 = vadd.f32 %v1146, %v1198
    %1200 = vdwg.mxu0
    %v1201 = vmax.f32 %v1077, 0.0
    %v1202 = vmax.f32 %v1079, 0.0
    %v1203 = vmax.f32 %v1183, 0.0
    %v1204 = vmax.f32 %v1185, 0.0
    %v1205 = vmax.f32 %v1081, 0.0
    %v1206 = vmax.f32 %v1083, 0.0
    %v1207 = vmax.f32 %v1187, 0.0
    %v1208 = vmax.f32 %v1189, 0.0
    %v1209 = vmax.f32 %v1087, 0.0
    %v1210 = vmax.f32 %v1089, 0.0
    %v1211 = vmax.f32 %v1193, 0.0
    %v1212 = vmax.f32 %v1195, 0.0
    %v1213 = vmax.f32 %v1091, 0.0
    %v1214 = vmax.f32 %v1093, 0.0
    %v1215 = vmax.f32 %v1197, 0.0
    %v1216 = vmax.f32 %v1199, 0.0
    %v1217 = vpack.c.bf16 %v1205, %v1201
    %v1218 = vpack.c.bf16 %v1206, %v1202
    %v1219 = vpack.c.bf16 %v1207, %v1203
    %v1220 = vpack.c.bf16 %v1208, %v1204
    %v1221 = vpack.c.bf16 %v1213, %v1209
    %v1222 = vpack.c.bf16 %v1214, %v1210
    %v1223 = vpack.c.bf16 %v1215, %v1211
    %v1224 = vpack.c.bf16 %v1216, %v1212
    %v1225 = vld [vmem:[%s3] sm:$0xf]
    %v1226 = vld [vmem:[%s3 + $0x4] sm:$0xf]
    %v1227 = vld [vmem:[%s3 + $0x8] sm:$0xf]
    %v1228 = vld [vmem:[%s3 + $0xc] sm:$0xf]
    %v1229 = vld [vmem:[%s3 + $0x10] sm:$0xf]
    %v1230 = vld [vmem:[%s3 + $0x14] sm:$0xf]
    %v1231 = vld [vmem:[%s3 + $0x18] sm:$0xf]
    %v1232 = vld [vmem:[%s3 + $0x1c] sm:$0xf]
    %v1233 = vld [vmem:[%s3 + $0x20] sm:$0xf]
    %v1234 = vld [vmem:[%s3 + $0x24] sm:$0xf]
    %v1235 = vld [vmem:[%s3 + $0x28] sm:$0xf]
    %v1236 = vld [vmem:[%s3 + $0x2c] sm:$0xf]
    %v1237 = vld [vmem:[%s3 + $0x30] sm:$0xf]
    %v1238 = vld [vmem:[%s3 + $0x34] sm:$0xf]
    %v1239 = vld [vmem:[%s3 + $0x38] sm:$0xf]
    %v1240 = vld [vmem:[%s3 + $0x3c] sm:$0xf]
    %v1241 = vld [vmem:[%s3 + $0x40] sm:$0xf]
    %v1242 = vld [vmem:[%s3 + $0x44] sm:$0xf]
    %v1243 = vld [vmem:[%s3 + $0x48] sm:$0xf]
    %v1244 = vld [vmem:[%s3 + $0x4c] sm:$0xf]
    %v1245 = vld [vmem:[%s3 + $0x50] sm:$0xf]
    %v1246 = vld [vmem:[%s3 + $0x54] sm:$0xf]
    %v1247 = vld [vmem:[%s3 + $0x58] sm:$0xf]
    %v1248 = vld [vmem:[%s3 + $0x5c] sm:$0xf]
    %v1249 = vld [vmem:[%s3 + $0x60] sm:$0xf]
    %v1250 = vld [vmem:[%s3 + $0x64] sm:$0xf]
    %v1251 = vld [vmem:[%s3 + $0x68] sm:$0xf]
    %v1252 = vld [vmem:[%s3 + $0x6c] sm:$0xf]
    %v1253 = vld [vmem:[%s3 + $0x70] sm:$0xf]
    %v1254 = vld [vmem:[%s3 + $0x74] sm:$0xf]
    %v1255 = vld [vmem:[%s3 + $0x78] sm:$0xf]
    %v1256 = vld [vmem:[%s3 + $0x7c] sm:$0xf]
    %v1257 = vld [vmem:[%s3 + $0x80] sm:$0xf]
    %v1258 = vld [vmem:[%s3 + $0x84] sm:$0xf]
    %v1259 = vld [vmem:[%s3 + $0x88] sm:$0xf]
    %v1260 = vld [vmem:[%s3 + $0x8c] sm:$0xf]
    %v1261 = vld [vmem:[%s3 + $0x90] sm:$0xf]
    %v1262 = vld [vmem:[%s3 + $0x94] sm:$0xf]
    %v1263 = vld [vmem:[%s3 + $0x98] sm:$0xf]
    %v1264 = vld [vmem:[%s3 + $0x9c] sm:$0xf]
    %v1265 = vld [vmem:[%s3 + $0xa0] sm:$0xf]
    %v1266 = vld [vmem:[%s3 + $0xa4] sm:$0xf]
    %v1267 = vld [vmem:[%s3 + $0xa8] sm:$0xf]
    %v1268 = vld [vmem:[%s3 + $0xac] sm:$0xf]
    %v1269 = vld [vmem:[%s3 + $0xb0] sm:$0xf]
    %v1270 = vld [vmem:[%s3 + $0xb4] sm:$0xf]
    %v1271 = vld [vmem:[%s3 + $0xb8] sm:$0xf]
    %v1272 = vld [vmem:[%s3 + $0xbc] sm:$0xf]
    %v1273 = vld [vmem:[%s3 + $0xc0] sm:$0xf]
    %v1274 = vld [vmem:[%s3 + $0xc4] sm:$0xf]
    %v1275 = vld [vmem:[%s3 + $0xc8] sm:$0xf]
    %v1276 = vld [vmem:[%s3 + $0xcc] sm:$0xf]
    %v1277 = vld [vmem:[%s3 + $0xd0] sm:$0xf]
    %v1278 = vld [vmem:[%s3 + $0xd4] sm:$0xf]
    %v1279 = vld [vmem:[%s3 + $0xd8] sm:$0xf]
    %v1280 = vld [vmem:[%s3 + $0xdc] sm:$0xf]
    %v1281 = vld [vmem:[%s3 + $0xe0] sm:$0xf]
    %v1282 = vld [vmem:[%s3 + $0xe4] sm:$0xf]
    %v1283 = vld [vmem:[%s3 + $0xe8] sm:$0xf]
    %v1284 = vld [vmem:[%s3 + $0xec] sm:$0xf]
    %v1285 = vld [vmem:[%s3 + $0xf0] sm:$0xf]
    %v1286 = vld [vmem:[%s3 + $0xf4] sm:$0xf]
    %v1287 = vld [vmem:[%s3 + $0xf8] sm:$0xf]
    %v1288 = vld [vmem:[%s3 + $0xfc] sm:$0xf]
    %v1289 = vld [vmem:[%s4] sm:$0x1]
    %v1291 = vlaneseq
    %v1292 = vshrl.u32 %v1291, 7
    %v1293 = vsub.s32 0, %v1292
    %v1294 = vrot.slane %v1289, %v1293
    %v1360 = vunpack.c.l.b16 %v1225
    %v1361 = vunpack.c.l.b16 %v1226
    %v1362 = vunpack.c.l.b16 %v1227
    %v1363 = vunpack.c.l.b16 %v1228
    %v1364 = vunpack.c.l.b16 %v1229
    %v1365 = vunpack.c.l.b16 %v1230
    %v1366 = vunpack.c.l.b16 %v1231
    %v1367 = vunpack.c.l.b16 %v1232
    %v1368 = vunpack.c.l.b16 %v1233
    %v1369 = vunpack.c.l.b16 %v1234
    %v1370 = vunpack.c.l.b16 %v1235
    %v1371 = vunpack.c.l.b16 %v1236
    %v1372 = vunpack.c.l.b16 %v1237
    %v1373 = vunpack.c.l.b16 %v1238
    %v1374 = vunpack.c.l.b16 %v1239
    %v1375 = vunpack.c.l.b16 %v1240
    %v1376 = vunpack.c.l.b16 %v1241
    %v1377 = vunpack.c.l.b16 %v1242
    %v1378 = vunpack.c.l.b16 %v1243
    %v1379 = vunpack.c.l.b16 %v1244
    %v1380 = vunpack.c.l.b16 %v1245
    %v1381 = vunpack.c.l.b16 %v1246
    %v1382 = vunpack.c.l.b16 %v1247
    %v1383 = vunpack.c.l.b16 %v1248
    %v1384 = vunpack.c.l.b16 %v1249
    %v1385 = vunpack.c.l.b16 %v1250
    %v1386 = vunpack.c.l.b16 %v1251
    %v1387 = vunpack.c.l.b16 %v1252
    %v1388 = vunpack.c.l.b16 %v1253
    %v1389 = vunpack.c.l.b16 %v1254
    %v1390 = vunpack.c.l.b16 %v1255
    %v1391 = vunpack.c.l.b16 %v1256
    %v1392 = vunpack.c.l.b16 %v1257
    %v1393 = vunpack.c.l.b16 %v1258
    %v1394 = vunpack.c.l.b16 %v1259
    %v1395 = vunpack.c.l.b16 %v1260
    %v1396 = vunpack.c.l.b16 %v1261
    %v1397 = vunpack.c.l.b16 %v1262
    %v1398 = vunpack.c.l.b16 %v1263
    %v1399 = vunpack.c.l.b16 %v1264
    %v1400 = vunpack.c.l.b16 %v1265
    %v1401 = vunpack.c.l.b16 %v1266
    %v1402 = vunpack.c.l.b16 %v1267
    %v1403 = vunpack.c.l.b16 %v1268
    %v1404 = vunpack.c.l.b16 %v1269
    %v1405 = vunpack.c.l.b16 %v1270
    %v1406 = vunpack.c.l.b16 %v1271
    %v1407 = vunpack.c.l.b16 %v1272
    %v1408 = vunpack.c.l.b16 %v1273
    %v1409 = vunpack.c.l.b16 %v1274
    %v1410 = vunpack.c.l.b16 %v1275
    %v1411 = vunpack.c.l.b16 %v1276
    %v1412 = vunpack.c.l.b16 %v1277
    %v1413 = vunpack.c.l.b16 %v1278
    %v1414 = vunpack.c.l.b16 %v1279
    %v1415 = vunpack.c.l.b16 %v1280
    %v1416 = vunpack.c.l.b16 %v1281
    %v1417 = vunpack.c.l.b16 %v1282
    %v1418 = vunpack.c.l.b16 %v1283
    %v1419 = vunpack.c.l.b16 %v1284
    %v1420 = vunpack.c.l.b16 %v1285
    %v1421 = vunpack.c.l.b16 %v1286
    %v1422 = vunpack.c.l.b16 %v1287
    %v1423 = vunpack.c.l.b16 %v1288
    %v1424 = vpack.c.b16 %v1361, %v1360
    %v1425 = vpack.c.b16 %v1363, %v1362
    %v1426 = vpack.c.b16 %v1365, %v1364
    %v1427 = vpack.c.b16 %v1367, %v1366
    %v1428 = vpack.c.b16 %v1369, %v1368
    %v1429 = vpack.c.b16 %v1371, %v1370
    %v1430 = vpack.c.b16 %v1373, %v1372
    %v1431 = vpack.c.b16 %v1375, %v1374
    %v1432 = vpack.c.b16 %v1377, %v1376
    %v1433 = vpack.c.b16 %v1379, %v1378
    %v1434 = vpack.c.b16 %v1381, %v1380
    %v1435 = vpack.c.b16 %v1383, %v1382
    %v1436 = vpack.c.b16 %v1385, %v1384
    %v1437 = vpack.c.b16 %v1387, %v1386
    %v1438 = vpack.c.b16 %v1389, %v1388
    %v1439 = vpack.c.b16 %v1391, %v1390
    %v1440 = vpack.c.b16 %v1393, %v1392
    %v1441 = vpack.c.b16 %v1395, %v1394
    %v1442 = vpack.c.b16 %v1397, %v1396
    %v1443 = vpack.c.b16 %v1399, %v1398
    %v1444 = vpack.c.b16 %v1401, %v1400
    %v1445 = vpack.c.b16 %v1403, %v1402
    %v1446 = vpack.c.b16 %v1405, %v1404
    %v1447 = vpack.c.b16 %v1407, %v1406
    %v1448 = vpack.c.b16 %v1409, %v1408
    %v1449 = vpack.c.b16 %v1411, %v1410
    %v1450 = vpack.c.b16 %v1413, %v1412
    %v1451 = vpack.c.b16 %v1415, %v1414
    %v1452 = vpack.c.b16 %v1417, %v1416
    %v1453 = vpack.c.b16 %v1419, %v1418
    %v1454 = vpack.c.b16 %v1421, %v1420
    %v1455 = vpack.c.b16 %v1423, %v1422
    %1488 = vmatprep.subr.bf16.mxu0 0
    %1489 = vmatpush1.bf16.msra.mxu0 %v1431
    %1490 = vmatprep.subr.bf16.mxu0 0
    %1491 = vmatpush1.bf16.msra.mxu0 %v1430
    %1492 = vmatprep.subr.bf16.mxu0 0
    %1493 = vmatpush1.bf16.msra.mxu0 %v1429
    %1494 = vmatprep.subr.bf16.mxu0 0
    %1495 = vmatpush1.bf16.msra.mxu0 %v1428
    %1496 = vmatprep.subr.bf16.mxu0 0
    %1497 = vmatpush1.bf16.msra.mxu0 %v1427
    %1498 = vmatprep.subr.bf16.mxu0 0
    %1499 = vmatpush1.bf16.msra.mxu0 %v1426
    %1500 = vmatprep.subr.bf16.mxu0 0
    %1501 = vmatpush1.bf16.msra.mxu0 %v1425
    %1502 = vmatprep.subr.bf16.mxu0 0
    %1503 = vmatpush1.bf16.msra.mxu0 %v1424
    %1504 = vmatprep.subr.bf16.mxu0 0
    %1505 = vmatpush2.bf16.msra.mxu0 %v1439
    %1506 = vmatprep.subr.bf16.mxu0 0
    %1507 = vmatpush2.bf16.msra.mxu0 %v1438
    %1508 = vmatprep.subr.bf16.mxu0 0
    %1509 = vmatpush2.bf16.msra.mxu0 %v1437
    %1510 = vmatprep.subr.bf16.mxu0 0
    %1511 = vmatpush2.bf16.msra.mxu0 %v1436
    %1512 = vmatprep.subr.bf16.mxu0 0
    %1513 = vmatpush2.bf16.msra.mxu0 %v1435
    %1514 = vmatprep.subr.bf16.mxu0 0
    %1515 = vmatpush2.bf16.msra.mxu0 %v1434
    %1516 = vmatprep.subr.bf16.mxu0 0
    %1517 = vmatpush2.bf16.msra.mxu0 %v1433
    %1518 = vmatprep.subr.bf16.mxu0 0
    %1519 = vmatpush2.bf16.msra.mxu0 %v1432
    %1520 = vmatprep.mubr.bf16.mxu0 %v1218
    %1521 = vmatmul.mubr.bf16.gmra.mxu0 %v1217
    %v1522 = vpop.f32.mrf.mxu0
    %v1523 = vadd.f32 %v1294, %v1522
    %v1524 = vpop.f32.mrf.mxu0
    %v1525 = vpop.f32.mrf.mxu0
    %v1526 = vadd.f32 %v1294, %v1525
    %v1527 = vpop.f32.mrf.mxu0
    %1528 = vmatprep.mubr.bf16.mxu0 %v1222
    %1529 = vmatmul.mubr.bf16.gmra.mxu0 %v1221
    %v1530 = vpop.f32.mrf.mxu0
    %v1531 = vadd.f32 %v1294, %v1530
    %v1532 = vpop.f32.mrf.mxu0
    %v1533 = vpop.f32.mrf.mxu0
    %v1534 = vadd.f32 %v1294, %v1533
    %v1535 = vpop.f32.mrf.mxu0
    %1536 = vdwg.mxu0
    %1537 = vmatprep.subr.bf16.mxu0 0
    %1538 = vmatpush1.bf16.msra.mxu0 %v1447
    %1539 = vmatprep.subr.bf16.mxu0 0
    %1540 = vmatpush1.bf16.msra.mxu0 %v1446
    %1541 = vmatprep.subr.bf16.mxu0 0
    %1542 = vmatpush1.bf16.msra.mxu0 %v1445
    %1543 = vmatprep.subr.bf16.mxu0 0
    %1544 = vmatpush1.bf16.msra.mxu0 %v1444
    %1545 = vmatprep.subr.bf16.mxu0 0
    %1546 = vmatpush1.bf16.msra.mxu0 %v1443
    %1547 = vmatprep.subr.bf16.mxu0 0
    %1548 = vmatpush1.bf16.msra.mxu0 %v1442
    %1549 = vmatprep.subr.bf16.mxu0 0
    %1550 = vmatpush1.bf16.msra.mxu0 %v1441
    %1551 = vmatprep.subr.bf16.mxu0 0
    %1552 = vmatpush1.bf16.msra.mxu0 %v1440
    %1553 = vmatprep.subr.bf16.mxu0 0
    %1554 = vmatpush2.bf16.msra.mxu0 %v1455
    %1555 = vmatprep.subr.bf16.mxu0 0
    %1556 = vmatpush2.bf16.msra.mxu0 %v1454
    %1557 = vmatprep.subr.bf16.mxu0 0
    %1558 = vmatpush2.bf16.msra.mxu0 %v1453
    %1559 = vmatprep.subr.bf16.mxu0 0
    %1560 = vmatpush2.bf16.msra.mxu0 %v1452
    %1561 = vmatprep.subr.bf16.mxu0 0
    %1562 = vmatpush2.bf16.msra.mxu0 %v1451
    %1563 = vmatprep.subr.bf16.mxu0 0
    %1564 = vmatpush2.bf16.msra.mxu0 %v1450
    %1565 = vmatprep.subr.bf16.mxu0 0
    %1566 = vmatpush2.bf16.msra.mxu0 %v1449
    %1567 = vmatprep.subr.bf16.mxu0 0
    %1568 = vmatpush2.bf16.msra.mxu0 %v1448
    %1569 = vmatprep.mubr.bf16.mxu0 %v1220
    %1570 = vmatmul.mubr.bf16.gmra.mxu0 %v1219
    %v1571 = vpop.f32.mrf.mxu0
    %v1572 = vadd.f32 %v1523, %v1571
    %v1573 = vpop.f32.mrf.mxu0
    %v1574 = vpop.f32.mrf.mxu0
    %v1575 = vadd.f32 %v1526, %v1574
    %v1576 = vpop.f32.mrf.mxu0
    %1577 = vmatprep.mubr.bf16.mxu0 %v1224
    %1578 = vmatmul.mubr.bf16.gmra.mxu0 %v1223
    %v1579 = vpop.f32.mrf.mxu0
    %v1580 = vadd.f32 %v1531, %v1579
    %v1581 = vpop.f32.mrf.mxu0
    %v1582 = vpop.f32.mrf.mxu0
    %v1583 = vadd.f32 %v1534, %v1582
    %v1584 = vpop.f32.mrf.mxu0
    %1585 = vdwg.mxu0
    %1586 = vst [vmem:[%s5] sm:$0xff] %v1572
    %1587 = vst [vmem:[%s5 + $0x8] sm:$0xff] %v1575
    %1588 = vst [vmem:[%s5 + $0x10] sm:$0xff] %v1580
    %1589 = vst [vmem:[%s5 + $0x18] sm:$0xff] %v1583
    // Predicated region
    $region26: #{msfem_forward.1} parent=1 // pred_check
      _
    $region27: #{msfem_forward.1} parent=1 // pred_check_branch
      %1591 = sbr.rel (0) target = $region29
    $region28: #{msfem_forward.1} parent=1 // pred_region
      _
    $region29: #{msfem_forward.1} parent=1 // pred_fallthru
      _
    // Predicated region
    $region30: #{msfem_forward.1} parent=1 // pred_check
      _
    $region31: #{msfem_forward.1} parent=1 // pred_check_branch
      %1593 = sbr.rel (0) target = $region33
    $region32: #{msfem_forward.1} parent=1 // pred_region
      _
    $region33: #{msfem_forward.1} parent=1 // pred_fallthru
      _
    %1594 = vsyncpa [#allocation5], 1

</llo_original>
